<compile_context>
chip_gen: v7x
topology: tpu7x:2x2x1
jax: 0.10.0
libtpu: 0.0.40
codegen_flags: <defaults>
</compile_context>

<pallas_src>
import functools

import jax
import jax.numpy as jnp
from jax.experimental import pallas as pl
from jax.experimental.pallas import tpu as pltpu

NUM_CLASSES = 10


def _round_up(n, m):
    return ((n + m - 1) // m) * m


def _gru_fc_kernel(x_ref, gru_ref, fc_ref, out_ref, *, seq_len, batch, hidden,
                   input_dim):
    S, B, H, D = seq_len, batch, hidden, input_dim
    H2, H4, H6 = 2 * H, 4 * H, 6 * H

    # Static row offsets inside the packed parameter blobs (mirrors pack_params).
    bin_row = 2 * D
    wrec_row = _round_up(bin_row + 1, 8)
    bhn_row = wrec_row + H2
    fc1b_row = H2
    fc2w_row = _round_up(fc1b_row + 1, 8)
    fc2b_row = fc2w_row + H

    x = x_ref[...]                                   # (S*B, 2D): [x[t] | x[S-1-t]]
    w_in = gru_ref[0:2 * D, :]                       # (2D, 6H) block-structured
    b_in = gru_ref[bin_row:bin_row + 1, :]           # (1, 6H)  b_ih + b_hh(r,z)
    w_rec = gru_ref[wrec_row:wrec_row + H2, :]       # (2H, 6H) block-diagonal
    b_hn = gru_ref[bhn_row:bhn_row + 1, 0:H2]        # (1, 2H)  [b_hn_f | b_hn_b]

    # --- prologue: ONE fused input projection for all timesteps & directions ---
    gi = jnp.dot(x, w_in, preferred_element_type=jnp.float32) + b_in   # (S*B, 6H)

    # --- fused serial recurrence: one (B,2H)x(2H,6H) dot per step -------------
    h = jnp.zeros((B, H2), jnp.float32)              # h_cat = [hf | hb]
    for t in range(S):
        gi_t = gi[t * B:(t + 1) * B, :]              # sublane-aligned 8-row slice
        gh = jnp.dot(h, w_rec, preferred_element_type=jnp.float32)     # (B, 6H)
        # r|z region is lanes 0:4H == 0:128 -> one vreg-aligned slice, one EUP pass.
        rz = jax.nn.sigmoid(gi_t[:, 0:H4] + gh[:, 0:H4])
        r = rz[:, 0:H2]                              # [r_f | r_b], aligned with h
        z = rz[:, H2:H4]                             # [z_f | z_b]
        n = jnp.tanh(gi_t[:, H4:H6] + r * (gh[:, H4:H6] + b_hn))
        h = (1.0 - z) * n + z * h

    # --- epilogue: fc1 + ReLU + fc2 (h already is cat(h_fwd_final, h_bwd_final))
    fc1_w = fc_ref[0:H2, :]                          # (2H, H)
    fc1_b = fc_ref[fc1b_row:fc1b_row + 1, :]         # (1, H)
    fc2_w = fc_ref[fc2w_row:fc2w_row + H, :]         # (H, H)  cols >= 10 are zero
    fc2_b = fc_ref[fc2b_row:fc2b_row + 1, :]         # (1, H)

    h1 = jnp.maximum(
        jnp.dot(h, fc1_w, preferred_element_type=jnp.float32) + fc1_b, 0.0)
    out_ref[...] = (jnp.dot(h1, fc2_w, preferred_element_type=jnp.float32)
                    + fc2_b)


def pack_params(params):
    """One-time host-side packing of the 14 raw tensors into 2 VMEM blobs."""
    f32 = jnp.float32
    w_ih_f, w_hh_f = params["w_ih_f"], params["w_hh_f"]
    b_ih_f, b_hh_f = params["b_ih_f"], params["b_hh_f"]
    w_ih_b, w_hh_b = params["w_ih_b"], params["w_hh_b"]
    b_ih_b, b_hh_b = params["b_ih_b"], params["b_hh_b"]
    D, H = w_ih_f.shape[1], w_ih_f.shape[2]
    assert H >= NUM_CLASSES, "fc2 lane padding scheme assumes hidden >= 10"

    zDH = jnp.zeros((D, H), f32)
    zHH = jnp.zeros((H, H), f32)

    # Fused input weight (2D, 6H); columns [r_f, r_b, z_f, z_b, n_f, n_b].
    # Rows 0:D multiply x[t] (forward stream); rows D:2D multiply x[S-1-t].
    w_in = jnp.concatenate([
        jnp.concatenate([w_ih_f[0], zDH, w_ih_f[1], zDH, w_ih_f[2], zDH], axis=1),
        jnp.concatenate([zDH, w_ih_b[0], zDH, w_ih_b[1], zDH, w_ih_b[2]], axis=1),
    ], axis=0)
    # Prologue bias: b_ih (all gates) + b_hh for r,z only (exact fold); b_hn is
    # excluded because it must remain inside the r-gated term.
    b_in = jnp.concatenate([
        b_ih_f[0] + b_hh_f[0], b_ih_b[0] + b_hh_b[0],
        b_ih_f[1] + b_hh_f[1], b_ih_b[1] + b_hh_b[1],
        b_ih_f[2],             b_ih_b[2],
    ], axis=1)
    # Block-diagonal recurrent weight (2H, 6H): rows 0:H <- hf, rows H:2H <- hb.
    w_rec = jnp.concatenate([
        jnp.concatenate([w_hh_f[0], zHH, w_hh_f[1], zHH, w_hh_f[2], zHH], axis=1),
        jnp.concatenate([zHH, w_hh_b[0], zHH, w_hh_b[1], zHH, w_hh_b[2]], axis=1),
    ], axis=0)
    b_hn = jnp.concatenate([b_hh_f[2], b_hh_b[2]], axis=1)         # (1, 2H)
    b_hn_row = jnp.pad(b_hn, ((0, 0), (0, 4 * H)))                 # (1, 6H)

    bin_row = 2 * D
    wrec_row = _round_up(bin_row + 1, 8)
    bhn_row = wrec_row + 2 * H
    gru_rows = _round_up(bhn_row + 1, 8)
    gru_blob = jnp.zeros((gru_rows, 6 * H), f32)
    gru_blob = gru_blob.at[0:2 * D].set(w_in)
    gru_blob = gru_blob.at[bin_row:bin_row + 1].set(b_in)
    gru_blob = gru_blob.at[wrec_row:wrec_row + 2 * H].set(w_rec)
    gru_blob = gru_blob.at[bhn_row:bhn_row + 1].set(b_hn_row)

    fc2_w = jnp.pad(params["fc2_w"], ((0, 0), (0, H - NUM_CLASSES)))
    fc2_b = jnp.pad(params["fc2_b"], ((0, 0), (0, H - NUM_CLASSES)))
    fc1b_row = 2 * H
    fc2w_row = _round_up(fc1b_row + 1, 8)
    fc2b_row = fc2w_row + H
    fc_rows = _round_up(fc2b_row + 1, 8)
    fc_blob = jnp.zeros((fc_rows, H), f32)
    fc_blob = fc_blob.at[0:2 * H].set(params["fc1_w"])
    fc_blob = fc_blob.at[fc1b_row:fc1b_row + 1].set(params["fc1_b"])
    fc_blob = fc_blob.at[fc2w_row:fc2w_row + H].set(fc2_w)
    fc_blob = fc_blob.at[fc2b_row:fc2b_row + 1].set(fc2_b)

    return {"gru_blob": gru_blob, "fc_blob": fc_blob}


@jax.jit
def gru_model_forward(x, packed):
    """x: (seq_len, batch, input_dim) f32; packed = pack_params(params).
    Returns (batch, 10) f32."""
    S, B, D = x.shape
    H = packed["fc_blob"].shape[1]

    # Pad batch to a sublane multiple so every in-kernel row slice is aligned.
    Bp = max(8, _round_up(B, 8))
    if Bp != B:
        x = jnp.pad(x, ((0, 0), (0, Bp - B), (0, 0)))
    # Fused input stream: columns 0:D are x[t], columns D:2D are x[S-1-t], so the
    # single prologue dot yields per-step gi for both directions directly.
    x_fused = jnp.concatenate([x, x[::-1]], axis=-1).reshape(S * Bp, 2 * D)

    kernel = functools.partial(_gru_fc_kernel, seq_len=S, batch=Bp, hidden=H,
                               input_dim=D)
    vmem = pl.BlockSpec(memory_space=pltpu.MemorySpace.VMEM)

    out = pl.pallas_call(
        kernel,
        out_shape=jax.ShapeDtypeStruct((Bp, H), jnp.float32),
        in_specs=[vmem, vmem, vmem],
        out_specs=vmem,
    )(x_fused, packed["gru_blob"], packed["fc_blob"])
    return out[:B, :NUM_CLASSES]


def gru_model_reference(x, params):
    """Pure-JAX reference with identical semantics (for verification)."""
    seq_len, B, D = x.shape
    H = params["fc1_w"].shape[1]

    def cell(x_t, h, wi, wh, bi, bh):
        r = jax.nn.sigmoid(x_t @ wi[0] + bi[0] + h @ wh[0] + bh[0])
        z = jax.nn.sigmoid(x_t @ wi[1] + bi[1] + h @ wh[1] + bh[1])
        n = jnp.tanh(x_t @ wi[2] + bi[2] + r * (h @ wh[2] + bh[2]))
        return (1.0 - z) * n + z * h

    hf = jnp.zeros((B, H), jnp.float32)
    hb = jnp.zeros((B, H), jnp.float32)
    for t in range(seq_len):
        hf = cell(x[t], hf, params["w_ih_f"], params["w_hh_f"],
                  params["b_ih_f"], params["b_hh_f"])
        hb = cell(x[seq_len - 1 - t], hb, params["w_ih_b"], params["w_hh_b"],
                  params["b_ih_b"], params["b_hh_b"])
    feat = jnp.concatenate([hf, hb], axis=1)
    h1 = jnp.maximum(feat @ params["fc1_w"] + params["fc1_b"], 0.0)
    return h1 @ params["fc2_w"] + params["fc2_b"]


def init_params(key, input_dim, hidden_dim):
    """Deterministic synthetic parameters (PyTorch-style uniform init)."""
    k = 1.0 / jnp.sqrt(jnp.float32(hidden_dim))
    names_shapes = [
        ("w_ih_f", (3, input_dim, hidden_dim)), ("w_hh_f", (3, hidden_dim, hidden_dim)),
        ("b_ih_f", (3, 1, hidden_dim)),          ("b_hh_f", (3, 1, hidden_dim)),
        ("w_ih_b", (3, input_dim, hidden_dim)), ("w_hh_b", (3, hidden_dim, hidden_dim)),
        ("b_ih_b", (3, 1, hidden_dim)),          ("b_hh_b", (3, 1, hidden_dim)),
        ("fc1_w", (2 * hidden_dim, hidden_dim)), ("fc1_b", (1, hidden_dim)),
        ("fc2_w", (hidden_dim, 10)),             ("fc2_b", (1, 10)),
    ]
    params = {}
    keys = jax.random.split(key, len(names_shapes))
    for (name, shape), kk in zip(names_shapes, keys):
        params[name] = jax.random.uniform(kk, shape, jnp.float32, minval=-k, maxval=k)
    return params


if __name__ == "__main__":
    SEQ_LEN, BATCH, INPUT_DIM, HIDDEN_DIM = 8, 4, 16, 32

    root = jax.random.PRNGKey(0)
    kx, kp = jax.random.split(root)
    x = jax.random.normal(kx, (SEQ_LEN, BATCH, INPUT_DIM), jnp.float32)
    params = init_params(kp, INPUT_DIM, HIDDEN_DIM)

    packed = pack_params(params)          # one-time weight packing (off hot path)
    out = jax.block_until_ready(gru_model_forward(x, packed))
    ref = jax.block_until_ready(gru_model_reference(x, params))

    assert out.shape == (BATCH, 10)
    assert jnp.allclose(out, ref, atol=1e-4, rtol=1e-4), (out, ref)

    print("KERNEL_OK")
</pallas_src>

<mosaic_0001>
module attributes {stable_mosaic.version = 11 : i64} {
  func.func @_gru_fc_kernel(%arg0: memref<64x32xf32, #tpu.memory_space<vmem>>, %arg1: memref<112x192xf32, #tpu.memory_space<vmem>>, %arg2: memref<112x32xf32, #tpu.memory_space<vmem>>, %arg3: memref<8x32xf32, #tpu.memory_space<vmem>>) attributes {dimension_semantics = [], scalar_prefetch = 0 : i64, scratch_operands = 0 : i64, tpu.core_type = #tpu.core_type<tc>} {
    %c0 = arith.constant 0 : index
    %c0_0 = arith.constant 0 : index
    %0 = vector.load %arg0[%c0, %c0_0] : memref<64x32xf32, #tpu.memory_space<vmem>>, vector<64x32xf32>
    %c0_1 = arith.constant 0 : index
    %c0_2 = arith.constant 0 : index
    %1 = vector.load %arg1[%c0_1, %c0_2] : memref<112x192xf32, #tpu.memory_space<vmem>>, vector<32x192xf32>
    %c32 = arith.constant 32 : index
    %c0_3 = arith.constant 0 : index
    %2 = vector.load %arg1[%c32, %c0_3] : memref<112x192xf32, #tpu.memory_space<vmem>>, vector<1x192xf32>
    %c40 = arith.constant 40 : index
    %c0_4 = arith.constant 0 : index
    %3 = vector.load %arg1[%c40, %c0_4] : memref<112x192xf32, #tpu.memory_space<vmem>>, vector<64x192xf32>
    %c104 = arith.constant 104 : index
    %c0_5 = arith.constant 0 : index
    %4 = vector.load %arg1[%c104, %c0_5] : memref<112x192xf32, #tpu.memory_space<vmem>>, vector<1x64xf32>
    %cst = arith.constant dense<0.000000e+00> : vector<64x192xf32>
    %5 = tpu.matmul %0, %1, %cst {dimension_numbers = #tpu.dot_dimension_numbers<[1], [0], [0], [1], [0, 0, 1, 1], [], []>} : vector<64x32xf32>, vector<32x192xf32>, vector<64x192xf32> -> vector<64x192xf32>
    %6 = vector.broadcast %2 : vector<1x192xf32> to vector<64x192xf32>
    %7 = arith.addf %5, %6 : vector<64x192xf32>
    %cst_6 = arith.constant 0.000000e+00 : f32
    %8 = vector.broadcast %cst_6 : f32 to vector<8x64xf32>
    %9 = vector.extract_strided_slice %7 {offsets = [0, 0], sizes = [8, 192], strides = [1, 1]} : vector<64x192xf32> to vector<8x192xf32>
    %cst_7 = arith.constant dense<0.000000e+00> : vector<8x192xf32>
    %10 = tpu.matmul %8, %3, %cst_7 {dimension_numbers = #tpu.dot_dimension_numbers<[1], [0], [0], [1], [0, 0, 1, 1], [], []>} : vector<8x64xf32>, vector<64x192xf32>, vector<8x192xf32> -> vector<8x192xf32>
    %11 = vector.extract_strided_slice %9 {offsets = [0, 0], sizes = [8, 128], strides = [1, 1]} : vector<8x192xf32> to vector<8x128xf32>
    %12 = vector.extract_strided_slice %10 {offsets = [0, 0], sizes = [8, 128], strides = [1, 1]} : vector<8x192xf32> to vector<8x128xf32>
    %13 = arith.addf %11, %12 : vector<8x128xf32>
    %14 = arith.negf %13 : vector<8x128xf32>
    %15 = math.exp %14 : vector<8x128xf32>
    %cst_8 = arith.constant 1.000000e+00 : f32
    %16 = vector.broadcast %cst_8 : f32 to vector<8x128xf32>
    %17 = arith.addf %16, %15 : vector<8x128xf32>
    %18 = arith.divf %16, %17 : vector<8x128xf32>
    %19 = vector.extract_strided_slice %18 {offsets = [0, 0], sizes = [8, 64], strides = [1, 1]} : vector<8x128xf32> to vector<8x64xf32>
    %20 = vector.extract_strided_slice %18 {offsets = [0, 64], sizes = [8, 64], strides = [1, 1]} : vector<8x128xf32> to vector<8x64xf32>
    %21 = vector.extract_strided_slice %9 {offsets = [0, 128], sizes = [8, 64], strides = [1, 1]} : vector<8x192xf32> to vector<8x64xf32>
    %22 = vector.extract_strided_slice %10 {offsets = [0, 128], sizes = [8, 64], strides = [1, 1]} : vector<8x192xf32> to vector<8x64xf32>
    %23 = vector.broadcast %4 : vector<1x64xf32> to vector<8x64xf32>
    %24 = arith.addf %22, %23 : vector<8x64xf32>
    %25 = arith.mulf %19, %24 : vector<8x64xf32>
    %26 = arith.addf %21, %25 : vector<8x64xf32>
    %27 = math.tanh %26 : vector<8x64xf32>
    %cst_9 = arith.constant 1.000000e+00 : f32
    %28 = vector.broadcast %cst_9 : f32 to vector<8x64xf32>
    %29 = arith.subf %28, %20 : vector<8x64xf32>
    %30 = arith.mulf %29, %27 : vector<8x64xf32>
    %31 = arith.mulf %20, %8 : vector<8x64xf32>
    %32 = arith.addf %30, %31 : vector<8x64xf32>
    %33 = vector.extract_strided_slice %7 {offsets = [8, 0], sizes = [8, 192], strides = [1, 1]} : vector<64x192xf32> to vector<8x192xf32>
    %cst_10 = arith.constant dense<0.000000e+00> : vector<8x192xf32>
    %34 = tpu.matmul %32, %3, %cst_10 {dimension_numbers = #tpu.dot_dimension_numbers<[1], [0], [0], [1], [0, 0, 1, 1], [], []>} : vector<8x64xf32>, vector<64x192xf32>, vector<8x192xf32> -> vector<8x192xf32>
    %35 = vector.extract_strided_slice %33 {offsets = [0, 0], sizes = [8, 128], strides = [1, 1]} : vector<8x192xf32> to vector<8x128xf32>
    %36 = vector.extract_strided_slice %34 {offsets = [0, 0], sizes = [8, 128], strides = [1, 1]} : vector<8x192xf32> to vector<8x128xf32>
    %37 = arith.addf %35, %36 : vector<8x128xf32>
    %38 = arith.negf %37 : vector<8x128xf32>
    %39 = math.exp %38 : vector<8x128xf32>
    %cst_11 = arith.constant 1.000000e+00 : f32
    %40 = vector.broadcast %cst_11 : f32 to vector<8x128xf32>
    %41 = arith.addf %40, %39 : vector<8x128xf32>
    %42 = arith.divf %40, %41 : vector<8x128xf32>
    %43 = vector.extract_strided_slice %42 {offsets = [0, 0], sizes = [8, 64], strides = [1, 1]} : vector<8x128xf32> to vector<8x64xf32>
    %44 = vector.extract_strided_slice %42 {offsets = [0, 64], sizes = [8, 64], strides = [1, 1]} : vector<8x128xf32> to vector<8x64xf32>
    %45 = vector.extract_strided_slice %33 {offsets = [0, 128], sizes = [8, 64], strides = [1, 1]} : vector<8x192xf32> to vector<8x64xf32>
    %46 = vector.extract_strided_slice %34 {offsets = [0, 128], sizes = [8, 64], strides = [1, 1]} : vector<8x192xf32> to vector<8x64xf32>
    %47 = vector.broadcast %4 : vector<1x64xf32> to vector<8x64xf32>
    %48 = arith.addf %46, %47 : vector<8x64xf32>
    %49 = arith.mulf %43, %48 : vector<8x64xf32>
    %50 = arith.addf %45, %49 : vector<8x64xf32>
    %51 = math.tanh %50 : vector<8x64xf32>
    %cst_12 = arith.constant 1.000000e+00 : f32
    %52 = vector.broadcast %cst_12 : f32 to vector<8x64xf32>
    %53 = arith.subf %52, %44 : vector<8x64xf32>
    %54 = arith.mulf %53, %51 : vector<8x64xf32>
    %55 = arith.mulf %44, %32 : vector<8x64xf32>
    %56 = arith.addf %54, %55 : vector<8x64xf32>
    %57 = vector.extract_strided_slice %7 {offsets = [16, 0], sizes = [8, 192], strides = [1, 1]} : vector<64x192xf32> to vector<8x192xf32>
    %cst_13 = arith.constant dense<0.000000e+00> : vector<8x192xf32>
    %58 = tpu.matmul %56, %3, %cst_13 {dimension_numbers = #tpu.dot_dimension_numbers<[1], [0], [0], [1], [0, 0, 1, 1], [], []>} : vector<8x64xf32>, vector<64x192xf32>, vector<8x192xf32> -> vector<8x192xf32>
    %59 = vector.extract_strided_slice %57 {offsets = [0, 0], sizes = [8, 128], strides = [1, 1]} : vector<8x192xf32> to vector<8x128xf32>
    %60 = vector.extract_strided_slice %58 {offsets = [0, 0], sizes = [8, 128], strides = [1, 1]} : vector<8x192xf32> to vector<8x128xf32>
    %61 = arith.addf %59, %60 : vector<8x128xf32>
    %62 = arith.negf %61 : vector<8x128xf32>
    %63 = math.exp %62 : vector<8x128xf32>
    %cst_14 = arith.constant 1.000000e+00 : f32
    %64 = vector.broadcast %cst_14 : f32 to vector<8x128xf32>
    %65 = arith.addf %64, %63 : vector<8x128xf32>
    %66 = arith.divf %64, %65 : vector<8x128xf32>
    %67 = vector.extract_strided_slice %66 {offsets = [0, 0], sizes = [8, 64], strides = [1, 1]} : vector<8x128xf32> to vector<8x64xf32>
    %68 = vector.extract_strided_slice %66 {offsets = [0, 64], sizes = [8, 64], strides = [1, 1]} : vector<8x128xf32> to vector<8x64xf32>
    %69 = vector.extract_strided_slice %57 {offsets = [0, 128], sizes = [8, 64], strides = [1, 1]} : vector<8x192xf32> to vector<8x64xf32>
    %70 = vector.extract_strided_slice %58 {offsets = [0, 128], sizes = [8, 64], strides = [1, 1]} : vector<8x192xf32> to vector<8x64xf32>
    %71 = vector.broadcast %4 : vector<1x64xf32> to vector<8x64xf32>
    %72 = arith.addf %70, %71 : vector<8x64xf32>
    %73 = arith.mulf %67, %72 : vector<8x64xf32>
    %74 = arith.addf %69, %73 : vector<8x64xf32>
    %75 = math.tanh %74 : vector<8x64xf32>
    %cst_15 = arith.constant 1.000000e+00 : f32
    %76 = vector.broadcast %cst_15 : f32 to vector<8x64xf32>
    %77 = arith.subf %76, %68 : vector<8x64xf32>
    %78 = arith.mulf %77, %75 : vector<8x64xf32>
    %79 = arith.mulf %68, %56 : vector<8x64xf32>
    %80 = arith.addf %78, %79 : vector<8x64xf32>
    %81 = vector.extract_strided_slice %7 {offsets = [24, 0], sizes = [8, 192], strides = [1, 1]} : vector<64x192xf32> to vector<8x192xf32>
    %cst_16 = arith.constant dense<0.000000e+00> : vector<8x192xf32>
    %82 = tpu.matmul %80, %3, %cst_16 {dimension_numbers = #tpu.dot_dimension_numbers<[1], [0], [0], [1], [0, 0, 1, 1], [], []>} : vector<8x64xf32>, vector<64x192xf32>, vector<8x192xf32> -> vector<8x192xf32>
    %83 = vector.extract_strided_slice %81 {offsets = [0, 0], sizes = [8, 128], strides = [1, 1]} : vector<8x192xf32> to vector<8x128xf32>
    %84 = vector.extract_strided_slice %82 {offsets = [0, 0], sizes = [8, 128], strides = [1, 1]} : vector<8x192xf32> to vector<8x128xf32>
    %85 = arith.addf %83, %84 : vector<8x128xf32>
    %86 = arith.negf %85 : vector<8x128xf32>
    %87 = math.exp %86 : vector<8x128xf32>
    %cst_17 = arith.constant 1.000000e+00 : f32
    %88 = vector.broadcast %cst_17 : f32 to vector<8x128xf32>
    %89 = arith.addf %88, %87 : vector<8x128xf32>
    %90 = arith.divf %88, %89 : vector<8x128xf32>
    %91 = vector.extract_strided_slice %90 {offsets = [0, 0], sizes = [8, 64], strides = [1, 1]} : vector<8x128xf32> to vector<8x64xf32>
    %92 = vector.extract_strided_slice %90 {offsets = [0, 64], sizes = [8, 64], strides = [1, 1]} : vector<8x128xf32> to vector<8x64xf32>
    %93 = vector.extract_strided_slice %81 {offsets = [0, 128], sizes = [8, 64], strides = [1, 1]} : vector<8x192xf32> to vector<8x64xf32>
    %94 = vector.extract_strided_slice %82 {offsets = [0, 128], sizes = [8, 64], strides = [1, 1]} : vector<8x192xf32> to vector<8x64xf32>
    %95 = vector.broadcast %4 : vector<1x64xf32> to vector<8x64xf32>
    %96 = arith.addf %94, %95 : vector<8x64xf32>
    %97 = arith.mulf %91, %96 : vector<8x64xf32>
    %98 = arith.addf %93, %97 : vector<8x64xf32>
    %99 = math.tanh %98 : vector<8x64xf32>
    %cst_18 = arith.constant 1.000000e+00 : f32
    %100 = vector.broadcast %cst_18 : f32 to vector<8x64xf32>
    %101 = arith.subf %100, %92 : vector<8x64xf32>
    %102 = arith.mulf %101, %99 : vector<8x64xf32>
    %103 = arith.mulf %92, %80 : vector<8x64xf32>
    %104 = arith.addf %102, %103 : vector<8x64xf32>
    %105 = vector.extract_strided_slice %7 {offsets = [32, 0], sizes = [8, 192], strides = [1, 1]} : vector<64x192xf32> to vector<8x192xf32>
    %cst_19 = arith.constant dense<0.000000e+00> : vector<8x192xf32>
    %106 = tpu.matmul %104, %3, %cst_19 {dimension_numbers = #tpu.dot_dimension_numbers<[1], [0], [0], [1], [0, 0, 1, 1], [], []>} : vector<8x64xf32>, vector<64x192xf32>, vector<8x192xf32> -> vector<8x192xf32>
    %107 = vector.extract_strided_slice %105 {offsets = [0, 0], sizes = [8, 128], strides = [1, 1]} : vector<8x192xf32> to vector<8x128xf32>
    %108 = vector.extract_strided_slice %106 {offsets = [0, 0], sizes = [8, 128], strides = [1, 1]} : vector<8x192xf32> to vector<8x128xf32>
    %109 = arith.addf %107, %108 : vector<8x128xf32>
    %110 = arith.negf %109 : vector<8x128xf32>
    %111 = math.exp %110 : vector<8x128xf32>
    %cst_20 = arith.constant 1.000000e+00 : f32
    %112 = vector.broadcast %cst_20 : f32 to vector<8x128xf32>
    %113 = arith.addf %112, %111 : vector<8x128xf32>
    %114 = arith.divf %112, %113 : vector<8x128xf32>
    %115 = vector.extract_strided_slice %114 {offsets = [0, 0], sizes = [8, 64], strides = [1, 1]} : vector<8x128xf32> to vector<8x64xf32>
    %116 = vector.extract_strided_slice %114 {offsets = [0, 64], sizes = [8, 64], strides = [1, 1]} : vector<8x128xf32> to vector<8x64xf32>
    %117 = vector.extract_strided_slice %105 {offsets = [0, 128], sizes = [8, 64], strides = [1, 1]} : vector<8x192xf32> to vector<8x64xf32>
    %118 = vector.extract_strided_slice %106 {offsets = [0, 128], sizes = [8, 64], strides = [1, 1]} : vector<8x192xf32> to vector<8x64xf32>
    %119 = vector.broadcast %4 : vector<1x64xf32> to vector<8x64xf32>
    %120 = arith.addf %118, %119 : vector<8x64xf32>
    %121 = arith.mulf %115, %120 : vector<8x64xf32>
    %122 = arith.addf %117, %121 : vector<8x64xf32>
    %123 = math.tanh %122 : vector<8x64xf32>
    %cst_21 = arith.constant 1.000000e+00 : f32
    %124 = vector.broadcast %cst_21 : f32 to vector<8x64xf32>
    %125 = arith.subf %124, %116 : vector<8x64xf32>
    %126 = arith.mulf %125, %123 : vector<8x64xf32>
    %127 = arith.mulf %116, %104 : vector<8x64xf32>
    %128 = arith.addf %126, %127 : vector<8x64xf32>
    %129 = vector.extract_strided_slice %7 {offsets = [40, 0], sizes = [8, 192], strides = [1, 1]} : vector<64x192xf32> to vector<8x192xf32>
    %cst_22 = arith.constant dense<0.000000e+00> : vector<8x192xf32>
    %130 = tpu.matmul %128, %3, %cst_22 {dimension_numbers = #tpu.dot_dimension_numbers<[1], [0], [0], [1], [0, 0, 1, 1], [], []>} : vector<8x64xf32>, vector<64x192xf32>, vector<8x192xf32> -> vector<8x192xf32>
    %131 = vector.extract_strided_slice %129 {offsets = [0, 0], sizes = [8, 128], strides = [1, 1]} : vector<8x192xf32> to vector<8x128xf32>
    %132 = vector.extract_strided_slice %130 {offsets = [0, 0], sizes = [8, 128], strides = [1, 1]} : vector<8x192xf32> to vector<8x128xf32>
    %133 = arith.addf %131, %132 : vector<8x128xf32>
    %134 = arith.negf %133 : vector<8x128xf32>
    %135 = math.exp %134 : vector<8x128xf32>
    %cst_23 = arith.constant 1.000000e+00 : f32
    %136 = vector.broadcast %cst_23 : f32 to vector<8x128xf32>
    %137 = arith.addf %136, %135 : vector<8x128xf32>
    %138 = arith.divf %136, %137 : vector<8x128xf32>
    %139 = vector.extract_strided_slice %138 {offsets = [0, 0], sizes = [8, 64], strides = [1, 1]} : vector<8x128xf32> to vector<8x64xf32>
    %140 = vector.extract_strided_slice %138 {offsets = [0, 64], sizes = [8, 64], strides = [1, 1]} : vector<8x128xf32> to vector<8x64xf32>
    %141 = vector.extract_strided_slice %129 {offsets = [0, 128], sizes = [8, 64], strides = [1, 1]} : vector<8x192xf32> to vector<8x64xf32>
    %142 = vector.extract_strided_slice %130 {offsets = [0, 128], sizes = [8, 64], strides = [1, 1]} : vector<8x192xf32> to vector<8x64xf32>
    %143 = vector.broadcast %4 : vector<1x64xf32> to vector<8x64xf32>
    %144 = arith.addf %142, %143 : vector<8x64xf32>
    %145 = arith.mulf %139, %144 : vector<8x64xf32>
    %146 = arith.addf %141, %145 : vector<8x64xf32>
    %147 = math.tanh %146 : vector<8x64xf32>
    %cst_24 = arith.constant 1.000000e+00 : f32
    %148 = vector.broadcast %cst_24 : f32 to vector<8x64xf32>
    %149 = arith.subf %148, %140 : vector<8x64xf32>
    %150 = arith.mulf %149, %147 : vector<8x64xf32>
    %151 = arith.mulf %140, %128 : vector<8x64xf32>
    %152 = arith.addf %150, %151 : vector<8x64xf32>
    %153 = vector.extract_strided_slice %7 {offsets = [48, 0], sizes = [8, 192], strides = [1, 1]} : vector<64x192xf32> to vector<8x192xf32>
    %cst_25 = arith.constant dense<0.000000e+00> : vector<8x192xf32>
    %154 = tpu.matmul %152, %3, %cst_25 {dimension_numbers = #tpu.dot_dimension_numbers<[1], [0], [0], [1], [0, 0, 1, 1], [], []>} : vector<8x64xf32>, vector<64x192xf32>, vector<8x192xf32> -> vector<8x192xf32>
    %155 = vector.extract_strided_slice %153 {offsets = [0, 0], sizes = [8, 128], strides = [1, 1]} : vector<8x192xf32> to vector<8x128xf32>
    %156 = vector.extract_strided_slice %154 {offsets = [0, 0], sizes = [8, 128], strides = [1, 1]} : vector<8x192xf32> to vector<8x128xf32>
    %157 = arith.addf %155, %156 : vector<8x128xf32>
    %158 = arith.negf %157 : vector<8x128xf32>
    %159 = math.exp %158 : vector<8x128xf32>
    %cst_26 = arith.constant 1.000000e+00 : f32
    %160 = vector.broadcast %cst_26 : f32 to vector<8x128xf32>
    %161 = arith.addf %160, %159 : vector<8x128xf32>
    %162 = arith.divf %160, %161 : vector<8x128xf32>
    %163 = vector.extract_strided_slice %162 {offsets = [0, 0], sizes = [8, 64], strides = [1, 1]} : vector<8x128xf32> to vector<8x64xf32>
    %164 = vector.extract_strided_slice %162 {offsets = [0, 64], sizes = [8, 64], strides = [1, 1]} : vector<8x128xf32> to vector<8x64xf32>
    %165 = vector.extract_strided_slice %153 {offsets = [0, 128], sizes = [8, 64], strides = [1, 1]} : vector<8x192xf32> to vector<8x64xf32>
    %166 = vector.extract_strided_slice %154 {offsets = [0, 128], sizes = [8, 64], strides = [1, 1]} : vector<8x192xf32> to vector<8x64xf32>
    %167 = vector.broadcast %4 : vector<1x64xf32> to vector<8x64xf32>
    %168 = arith.addf %166, %167 : vector<8x64xf32>
    %169 = arith.mulf %163, %168 : vector<8x64xf32>
    %170 = arith.addf %165, %169 : vector<8x64xf32>
    %171 = math.tanh %170 : vector<8x64xf32>
    %cst_27 = arith.constant 1.000000e+00 : f32
    %172 = vector.broadcast %cst_27 : f32 to vector<8x64xf32>
    %173 = arith.subf %172, %164 : vector<8x64xf32>
    %174 = arith.mulf %173, %171 : vector<8x64xf32>
    %175 = arith.mulf %164, %152 : vector<8x64xf32>
    %176 = arith.addf %174, %175 : vector<8x64xf32>
    %177 = vector.extract_strided_slice %7 {offsets = [56, 0], sizes = [8, 192], strides = [1, 1]} : vector<64x192xf32> to vector<8x192xf32>
    %cst_28 = arith.constant dense<0.000000e+00> : vector<8x192xf32>
    %178 = tpu.matmul %176, %3, %cst_28 {dimension_numbers = #tpu.dot_dimension_numbers<[1], [0], [0], [1], [0, 0, 1, 1], [], []>} : vector<8x64xf32>, vector<64x192xf32>, vector<8x192xf32> -> vector<8x192xf32>
    %179 = vector.extract_strided_slice %177 {offsets = [0, 0], sizes = [8, 128], strides = [1, 1]} : vector<8x192xf32> to vector<8x128xf32>
    %180 = vector.extract_strided_slice %178 {offsets = [0, 0], sizes = [8, 128], strides = [1, 1]} : vector<8x192xf32> to vector<8x128xf32>
    %181 = arith.addf %179, %180 : vector<8x128xf32>
    %182 = arith.negf %181 : vector<8x128xf32>
    %183 = math.exp %182 : vector<8x128xf32>
    %cst_29 = arith.constant 1.000000e+00 : f32
    %184 = vector.broadcast %cst_29 : f32 to vector<8x128xf32>
    %185 = arith.addf %184, %183 : vector<8x128xf32>
    %186 = arith.divf %184, %185 : vector<8x128xf32>
    %187 = vector.extract_strided_slice %186 {offsets = [0, 0], sizes = [8, 64], strides = [1, 1]} : vector<8x128xf32> to vector<8x64xf32>
    %188 = vector.extract_strided_slice %186 {offsets = [0, 64], sizes = [8, 64], strides = [1, 1]} : vector<8x128xf32> to vector<8x64xf32>
    %189 = vector.extract_strided_slice %177 {offsets = [0, 128], sizes = [8, 64], strides = [1, 1]} : vector<8x192xf32> to vector<8x64xf32>
    %190 = vector.extract_strided_slice %178 {offsets = [0, 128], sizes = [8, 64], strides = [1, 1]} : vector<8x192xf32> to vector<8x64xf32>
    %191 = vector.broadcast %4 : vector<1x64xf32> to vector<8x64xf32>
    %192 = arith.addf %190, %191 : vector<8x64xf32>
    %193 = arith.mulf %187, %192 : vector<8x64xf32>
    %194 = arith.addf %189, %193 : vector<8x64xf32>
    %195 = math.tanh %194 : vector<8x64xf32>
    %cst_30 = arith.constant 1.000000e+00 : f32
    %196 = vector.broadcast %cst_30 : f32 to vector<8x64xf32>
    %197 = arith.subf %196, %188 : vector<8x64xf32>
    %198 = arith.mulf %197, %195 : vector<8x64xf32>
    %199 = arith.mulf %188, %176 : vector<8x64xf32>
    %200 = arith.addf %198, %199 : vector<8x64xf32>
    %c0_31 = arith.constant 0 : index
    %c0_32 = arith.constant 0 : index
    %201 = vector.load %arg2[%c0_31, %c0_32] : memref<112x32xf32, #tpu.memory_space<vmem>>, vector<64x32xf32>
    %c64 = arith.constant 64 : index
    %c0_33 = arith.constant 0 : index
    %202 = vector.load %arg2[%c64, %c0_33] : memref<112x32xf32, #tpu.memory_space<vmem>>, vector<1x32xf32>
    %c72 = arith.constant 72 : index
    %c0_34 = arith.constant 0 : index
    %203 = vector.load %arg2[%c72, %c0_34] : memref<112x32xf32, #tpu.memory_space<vmem>>, vector<32x32xf32>
    %c104_35 = arith.constant 104 : index
    %c0_36 = arith.constant 0 : index
    %204 = vector.load %arg2[%c104_35, %c0_36] : memref<112x32xf32, #tpu.memory_space<vmem>>, vector<1x32xf32>
    %cst_37 = arith.constant dense<0.000000e+00> : vector<8x32xf32>
    %205 = tpu.matmul %200, %201, %cst_37 {dimension_numbers = #tpu.dot_dimension_numbers<[1], [0], [0], [1], [0, 0, 1, 1], [], []>} : vector<8x64xf32>, vector<64x32xf32>, vector<8x32xf32> -> vector<8x32xf32>
    %206 = vector.broadcast %202 : vector<1x32xf32> to vector<8x32xf32>
    %207 = arith.addf %205, %206 : vector<8x32xf32>
    %cst_38 = arith.constant 0.000000e+00 : f32
    %208 = vector.broadcast %cst_38 : f32 to vector<8x32xf32>
    %209 = arith.maximumf %207, %208 : vector<8x32xf32>
    %cst_39 = arith.constant dense<0.000000e+00> : vector<8x32xf32>
    %210 = tpu.matmul %209, %203, %cst_39 {dimension_numbers = #tpu.dot_dimension_numbers<[1], [0], [0], [1], [0, 0, 1, 1], [], []>} : vector<8x32xf32>, vector<32x32xf32>, vector<8x32xf32> -> vector<8x32xf32>
    %211 = vector.broadcast %204 : vector<1x32xf32> to vector<8x32xf32>
    %212 = arith.addf %210, %211 : vector<8x32xf32>
    %c0_40 = arith.constant 0 : index
    %c0_41 = arith.constant 0 : index
    %213 = vector.load %arg3[%c0_40, %c0_41] : memref<8x32xf32, #tpu.memory_space<vmem>>, vector<8x32xf32>
    tpu.vector_store %arg3[%c0_40, %c0_41], %212 {strides = array<i32>} : memref<8x32xf32, #tpu.memory_space<vmem>>, vector<8x32xf32>,
    return
  }
}

</mosaic_0001>

<llo_original>
// kernel: gru_model_forward.1
$region0: #{gru_model_forward.1}
  #allocation0 [shape = 'u32[]', space=smem, size = 0x4, offset = 0x4, fixed_abs, tag = 'smem constant byte address 0x4 - core index']
  #allocation1 [shape = 'u32[144,128]{1,0:T(1,128)}', space=vmem, size = 0x12000, scoped, tag = 'internal scratch']
  %s0 = inlined_call_operand.vmem [shape: f32[64,32], index: 0, kind: input, shape index: {}]
  %s1 = inlined_call_operand.vmem [shape: f32[112,192], index: 1, kind: input, shape index: {}]
  %s2 = inlined_call_operand.vmem [shape: f32[112,32], index: 2, kind: input, shape index: {}]
  %s3 = inlined_call_operand.vmem [shape: f32[8,32], index: 3, kind: output, shape index: {}]
  %s4 = sld [smem:[#allocation0]]
  $region22: #{gru_model_forward.1} parent=0
    _
  %s6 = ssub.s32 1, %s4
  %s7 = scalar_select 0, %s6, %s4
  // Predicated region
  $region2: #{gru_model_forward.1} parent=0 // pred_check
    _
  $region3: #{gru_model_forward.1} parent=0 // pred_check_branch
    %9 = sbr.rel (0) target = $region5
  $region4: #{gru_model_forward.1} parent=0 // pred_region
    _
  $region5: #{gru_model_forward.1} parent=0 // pred_fallthru
    _
  // Predicated region
  $region6: #{gru_model_forward.1} parent=0 // pred_check
    _
  $region7: #{gru_model_forward.1} parent=0 // pred_check_branch
    %11 = sbr.rel (0) target = $region9
  $region8: #{gru_model_forward.1} parent=0 // pred_region
    _
  $region9: #{gru_model_forward.1} parent=0 // pred_fallthru
    _
  // Predicated region
  $region10: #{gru_model_forward.1} parent=0 // pred_check
    _
  $region11: #{gru_model_forward.1} parent=0 // pred_check_branch
    %13 = sbr.rel (0) target = $region13
  $region12: #{gru_model_forward.1} parent=0 // pred_region
    _
  $region13: #{gru_model_forward.1} parent=0 // pred_fallthru
    _
  %v14 = vld [vmem:[%s0] sm:$0xff]
  %v15 = vld [vmem:[%s0 + $0x8] sm:$0xff]
  %v16 = vld [vmem:[%s0 + $0x10] sm:$0xff]
  %v17 = vld [vmem:[%s0 + $0x18] sm:$0xff]
  %v18 = vld [vmem:[%s0 + $0x20] sm:$0xff]
  %v19 = vld [vmem:[%s0 + $0x28] sm:$0xff]
  %v20 = vld [vmem:[%s0 + $0x30] sm:$0xff]
  %v21 = vld [vmem:[%s0 + $0x38] sm:$0xff]
  %v22 = vld [vmem:[%s1] sm:$0xff]
  %v23 = vld [vmem:[%s1 + $0x8] sm:$0xff]
  %v24 = vld [vmem:[%s1 + $0x10] sm:$0xff]
  %v25 = vld [vmem:[%s1 + $0x18] sm:$0xff]
  %v26 = vld [vmem:[%s1 + $0x20] sm:$0xff]
  %v27 = vld [vmem:[%s1 + $0x28] sm:$0xff]
  %v28 = vld [vmem:[%s1 + $0x30] sm:$0xff]
  %v29 = vld [vmem:[%s1 + $0x38] sm:$0xff]
  %s30 = scalar_lea.vmem %s1, 64
  %v31 = vld [vmem:[%s30] ss:$8 sm:$0x3]
  %v32 = vld [vmem:[%s1 + $0x50] sm:$0xff]
  %v33 = vld [vmem:[%s1 + $0x58] sm:$0xff]
  %v34 = vld [vmem:[%s1 + $0x60] sm:$0xff]
  %v35 = vld [vmem:[%s1 + $0x68] sm:$0xff]
  %v36 = vld [vmem:[%s1 + $0x70] sm:$0xff]
  %v37 = vld [vmem:[%s1 + $0x78] sm:$0xff]
  %v38 = vld [vmem:[%s1 + $0x80] sm:$0xff]
  %v39 = vld [vmem:[%s1 + $0x88] sm:$0xff]
  %v40 = vld [vmem:[%s1 + $0x90] sm:$0xff]
  %v41 = vld [vmem:[%s1 + $0x98] sm:$0xff]
  %v42 = vld [vmem:[%s1 + $0xa0] sm:$0xff]
  %v43 = vld [vmem:[%s1 + $0xa8] sm:$0xff]
  %v44 = vld [vmem:[%s1 + $0xb0] sm:$0xff]
  %v45 = vld [vmem:[%s1 + $0xb8] sm:$0xff]
  %v46 = vld [vmem:[%s1 + $0xc0] sm:$0xff]
  %v47 = vld [vmem:[%s1 + $0xc8] sm:$0xff]
  %v48 = vld [vmem:[%s1 + $0xd0] ss:$0 sm:$0xff]
  %v50 = vlaneseq
  %v51 = vshrl.u32 %v50, 7
  %v52 = vsub.s32 0, %v51
  %v53 = vrot.slane %v31, %v52
  %v54 = vlaneseq
  %v55 = vshrl.u32 %v54, 7
  %v56 = vsub.s32 1, %v55
  %v57 = vrot.slane %v31, %v56
  %vm60 = vcmask 261120
  %v62 = vsel %vm60, %v14, 0
  %v65 = vsel %vm60, %v15, 0
  %v68 = vsel %vm60, %v16, 0
  %v71 = vsel %vm60, %v17, 0
  %v74 = vsel %vm60, %v18, 0
  %v77 = vsel %vm60, %v19, 0
  %v80 = vsel %vm60, %v20, 0
  %v83 = vsel %vm60, %v21, 0
  %85 = vmatprep.subr.mxu0 %v23
  %86 = vmatpush1.msra.mxu0 %v22
  %87 = vmatprep.subr.mxu0 %v25
  %88 = vmatpush1.msra.mxu0 %v24
  %89 = vmatprep.subr.mxu0 %v27
  %90 = vmatpush1.msra.mxu0 %v26
  %91 = vmatprep.subr.mxu0 %v29
  %92 = vmatpush1.msra.mxu0 %v28
  %93 = vmatprep.subr.mxu0 0.0
  %94 = vmatpush1.msra.mxu0 0.0
  %95 = vmatprep.subr.mxu0 0.0
  %96 = vmatpush1.msra.mxu0 0.0
  %97 = vmatprep.subr.mxu0 0.0
  %98 = vmatpush1.msra.mxu0 0.0
  %99 = vmatprep.subr.mxu0 0.0
  %100 = vmatpush1.msra.mxu0 0.0
  %101 = vmatprep.subr.mxu0 0.0
  %102 = vmatpush1.msra.mxu0 0.0
  %103 = vmatprep.subr.mxu0 0.0
  %104 = vmatpush1.msra.mxu0 0.0
  %105 = vmatprep.subr.mxu0 0.0
  %106 = vmatpush1.msra.mxu0 0.0
  %107 = vmatprep.subr.mxu0 0.0
  %108 = vmatpush1.msra.mxu0 0.0
  %109 = vmatprep.subr.mxu0 0.0
  %110 = vmatpush1.msra.mxu0 0.0
  %111 = vmatprep.subr.mxu0 0.0
  %112 = vmatpush1.msra.mxu0 0.0
  %113 = vmatprep.subr.mxu0 0.0
  %114 = vmatpush1.msra.mxu0 0.0
  %115 = vmatprep.subr.mxu0 0.0
  %116 = vmatpush1.msra.mxu0 0.0
  %117 = vmatprep.subr.mxu0 0.0
  %118 = vmatpush1.msra.mxu0 0.0
  %119 = vmatprep.subr.mxu0 0.0
  %120 = vmatpush1.msra.mxu0 0.0
  %121 = vmatprep.subr.mxu0 0.0
  %122 = vmatpush1.msra.mxu0 0.0
  %123 = vmatprep.subr.mxu0 0.0
  %124 = vmatpush1.msra.mxu0 0.0
  %125 = vmatprep.subr.mxu0 0.0
  %126 = vmatpush1.msra.mxu0 0.0
  %127 = vmatprep.subr.mxu0 0.0
  %128 = vmatpush1.msra.mxu0 0.0
  %129 = vmatprep.subr.mxu0 0.0
  %130 = vmatpush1.msra.mxu0 0.0
  %131 = vmatprep.subr.mxu0 0.0
  %132 = vmatpush1.msra.mxu0 0.0
  %133 = vmatprep.subr.mxu0 0.0
  %134 = vmatpush1.msra.mxu0 0.0
  %135 = vmatprep.subr.mxu0 0.0
  %136 = vmatpush1.msra.mxu0 0.0
  %137 = vmatprep.subr.mxu0 0.0
  %138 = vmatpush1.msra.mxu0 0.0
  %139 = vmatprep.subr.mxu0 0.0
  %140 = vmatpush1.msra.mxu0 0.0
  %141 = vmatprep.subr.mxu0 0.0
  %142 = vmatpush1.msra.mxu0 0.0
  %143 = vmatprep.subr.mxu0 0.0
  %144 = vmatpush1.msra.mxu0 0.0
  %145 = vmatprep.subr.mxu0 0.0
  %146 = vmatpush1.msra.mxu0 0.0
  %147 = vmatprep.subr.mxu0 0.0
  %148 = vmatpush1.msra.mxu0 0.0
  %149 = vmatprep.mubr.f32.mxu0 0.0
  %150 = vmatmul.mubr.f32.gmra.mrb[0].mxu0 %v62
  %v151 = vpop.f32.mrb[0].mxu0
  %v152 = vadd.f32 %v53, %v151
  %v153 = vpop.f32.mrb[0].mxu0
  %v154 = vadd.f32 %v57, %v153
  %155 = vmatprep.mubr.f32.mxu0 0.0
  %156 = vmatmul.mubr.f32.gmra.mrb[0].mxu0 %v65
  %v157 = vpop.f32.mrb[0].mxu0
  %v158 = vadd.f32 %v53, %v157
  %v159 = vpop.f32.mrb[0].mxu0
  %v160 = vadd.f32 %v57, %v159
  %161 = vmatprep.mubr.f32.mxu0 0.0
  %162 = vmatmul.mubr.f32.gmra.mrb[0].mxu0 %v68
  %v163 = vpop.f32.mrb[0].mxu0
  %v164 = vadd.f32 %v53, %v163
  %v165 = vpop.f32.mrb[0].mxu0
  %v166 = vadd.f32 %v57, %v165
  %167 = vmatprep.mubr.f32.mxu0 0.0
  %168 = vmatmul.mubr.f32.gmra.mrb[0].mxu0 %v71
  %v169 = vpop.f32.mrb[0].mxu0
  %v170 = vadd.f32 %v53, %v169
  %v171 = vpop.f32.mrb[0].mxu0
  %v172 = vadd.f32 %v57, %v171
  %173 = vmatprep.mubr.f32.mxu0 0.0
  %174 = vmatmul.mubr.f32.gmra.mrb[0].mxu0 %v74
  %v175 = vpop.f32.mrb[0].mxu0
  %v176 = vadd.f32 %v53, %v175
  %v177 = vpop.f32.mrb[0].mxu0
  %v178 = vadd.f32 %v57, %v177
  %179 = vmatprep.mubr.f32.mxu0 0.0
  %180 = vmatmul.mubr.f32.gmra.mrb[0].mxu0 %v77
  %v181 = vpop.f32.mrb[0].mxu0
  %v182 = vadd.f32 %v53, %v181
  %v183 = vpop.f32.mrb[0].mxu0
  %v184 = vadd.f32 %v57, %v183
  %185 = vmatprep.mubr.f32.mxu0 0.0
  %186 = vmatmul.mubr.f32.gmra.mrb[0].mxu0 %v80
  %v187 = vpop.f32.mrb[0].mxu0
  %v188 = vadd.f32 %v53, %v187
  %v189 = vpop.f32.mrb[0].mxu0
  %v190 = vadd.f32 %v57, %v189
  %191 = vmatprep.mubr.f32.mxu0 0.0
  %192 = vmatmul.mubr.f32.gmra.mrb[0].mxu0 %v83
  %v193 = vpop.f32.mrb[0].mxu0
  %v194 = vadd.f32 %v53, %v193
  %v195 = vpop.f32.mrb[0].mxu0
  %v196 = vadd.f32 %v57, %v195
  %197 = vdwg.mxu0
  %vm198 = vcmask 523264
  %v200 = vsel %vm198, 0.0, 0
  %202 = vmatprep.subr.mxu0 %v33
  %203 = vmatpush1.msra.mxu0 %v32
  %204 = vmatprep.subr.mxu0 %v35
  %205 = vmatpush1.msra.mxu0 %v34
  %206 = vmatprep.subr.mxu0 %v37
  %207 = vmatpush1.msra.mxu0 %v36
  %208 = vmatprep.subr.mxu0 %v39
  %209 = vmatpush1.msra.mxu0 %v38
  %210 = vmatprep.subr.mxu0 %v41
  %211 = vmatpush1.msra.mxu0 %v40
  %212 = vmatprep.subr.mxu0 %v43
  %213 = vmatpush1.msra.mxu0 %v42
  %214 = vmatprep.subr.mxu0 %v45
  %215 = vmatpush1.msra.mxu0 %v44
  %216 = vmatprep.subr.mxu0 %v47
  %217 = vmatpush1.msra.mxu0 %v46
  %218 = vmatprep.subr.mxu0 0.0
  %219 = vmatpush1.msra.mxu0 0.0
  %220 = vmatprep.subr.mxu0 0.0
  %221 = vmatpush1.msra.mxu0 0.0
  %222 = vmatprep.subr.mxu0 0.0
  %223 = vmatpush1.msra.mxu0 0.0
  %224 = vmatprep.subr.mxu0 0.0
  %225 = vmatpush1.msra.mxu0 0.0
  %226 = vmatprep.subr.mxu0 0.0
  %227 = vmatpush1.msra.mxu0 0.0
  %228 = vmatprep.subr.mxu0 0.0
  %229 = vmatpush1.msra.mxu0 0.0
  %230 = vmatprep.subr.mxu0 0.0
  %231 = vmatpush1.msra.mxu0 0.0
  %232 = vmatprep.subr.mxu0 0.0
  %233 = vmatpush1.msra.mxu0 0.0
  %234 = vmatprep.subr.mxu0 0.0
  %235 = vmatpush1.msra.mxu0 0.0
  %236 = vmatprep.subr.mxu0 0.0
  %237 = vmatpush1.msra.mxu0 0.0
  %238 = vmatprep.subr.mxu0 0.0
  %239 = vmatpush1.msra.mxu0 0.0
  %240 = vmatprep.subr.mxu0 0.0
  %241 = vmatpush1.msra.mxu0 0.0
  %242 = vmatprep.subr.mxu0 0.0
  %243 = vmatpush1.msra.mxu0 0.0
  %244 = vmatprep.subr.mxu0 0.0
  %245 = vmatpush1.msra.mxu0 0.0
  %246 = vmatprep.subr.mxu0 0.0
  %247 = vmatpush1.msra.mxu0 0.0
  %248 = vmatprep.subr.mxu0 0.0
  %249 = vmatpush1.msra.mxu0 0.0
  %250 = vmatprep.subr.mxu0 0.0
  %251 = vmatpush1.msra.mxu0 0.0
  %252 = vmatprep.subr.mxu0 0.0
  %253 = vmatpush1.msra.mxu0 0.0
  %254 = vmatprep.subr.mxu0 0.0
  %255 = vmatpush1.msra.mxu0 0.0
  %256 = vmatprep.subr.mxu0 0.0
  %257 = vmatpush1.msra.mxu0 0.0
  %258 = vmatprep.subr.mxu0 0.0
  %259 = vmatpush1.msra.mxu0 0.0
  %260 = vmatprep.subr.mxu0 0.0
  %261 = vmatpush1.msra.mxu0 0.0
  %262 = vmatprep.subr.mxu0 0.0
  %263 = vmatpush1.msra.mxu0 0.0
  %264 = vmatprep.subr.mxu0 0.0
  %265 = vmatpush1.msra.mxu0 0.0
  %266 = vmatprep.mubr.f32.mxu0 0.0
  %267 = vmatmul.mubr.f32.gmra.mrb[0].mxu0 %v200
  %v268 = vpop.f32.mrb[0].mxu0
  %v269 = vadd.f32 0.0, %v268
  %v270 = vpop.f32.mrb[0].mxu0
  %v271 = vadd.f32 0.0, %v270
  %272 = vdwg.mxu0
  %v273 = vadd.f32 %v152, %v269
  %v274 = vxor.u32 %v273, 2147483648
  %v275 = vmul.f32 %v274, 1.442695
  %v276 = vpow.pop %v275
  %v277 = vadd.f32 %v276, 1.0
  %v278 = vrcp.pop %v277
  %v279 = vmul.f32 1.0, %v278
  %v280 = vadd.f32 %v271, %v48
  %v281 = vmul.f32 %v279, %v280
  %v282 = vadd.f32 %v154, %v281
  %v283 = vtanh.pop %v282
  %v284 = vsub.f32 1.0, %v279
  %286 = vrot.lane.b32.xlu0 %v283, 64
  %v287 = vpop.permute.xlu0 %286
  %v289 = vmul.f32 %v284, %v287
  %v290 = vmul.f32 %v279, 0.0
  %v291 = vadd.f32 %v289, %v290
  %293 = vrot.lane.b32.xlu0 %v291, 64
  %v294 = vpop.permute.xlu0 %293
  %v295 = vsel %vm198, %v294, 0
  %297 = vmatprep.subr.mxu0 %v33
  %298 = vmatpush1.msra.mxu0 %v32
  %299 = vmatprep.subr.mxu0 %v35
  %300 = vmatpush1.msra.mxu0 %v34
  %301 = vmatprep.subr.mxu0 %v37
  %302 = vmatpush1.msra.mxu0 %v36
  %303 = vmatprep.subr.mxu0 %v39
  %304 = vmatpush1.msra.mxu0 %v38
  %305 = vmatprep.subr.mxu0 %v41
  %306 = vmatpush1.msra.mxu0 %v40
  %307 = vmatprep.subr.mxu0 %v43
  %308 = vmatpush1.msra.mxu0 %v42
  %309 = vmatprep.subr.mxu0 %v45
  %310 = vmatpush1.msra.mxu0 %v44
  %311 = vmatprep.subr.mxu0 %v47
  %312 = vmatpush1.msra.mxu0 %v46
  %313 = vmatprep.subr.mxu0 0.0
  %314 = vmatpush1.msra.mxu0 0.0
  %315 = vmatprep.subr.mxu0 0.0
  %316 = vmatpush1.msra.mxu0 0.0
  %317 = vmatprep.subr.mxu0 0.0
  %318 = vmatpush1.msra.mxu0 0.0
  %319 = vmatprep.subr.mxu0 0.0
  %320 = vmatpush1.msra.mxu0 0.0
  %321 = vmatprep.subr.mxu0 0.0
  %322 = vmatpush1.msra.mxu0 0.0
  %323 = vmatprep.subr.mxu0 0.0
  %324 = vmatpush1.msra.mxu0 0.0
  %325 = vmatprep.subr.mxu0 0.0
  %326 = vmatpush1.msra.mxu0 0.0
  %327 = vmatprep.subr.mxu0 0.0
  %328 = vmatpush1.msra.mxu0 0.0
  %329 = vmatprep.subr.mxu0 0.0
  %330 = vmatpush1.msra.mxu0 0.0
  %331 = vmatprep.subr.mxu0 0.0
  %332 = vmatpush1.msra.mxu0 0.0
  %333 = vmatprep.subr.mxu0 0.0
  %334 = vmatpush1.msra.mxu0 0.0
  %335 = vmatprep.subr.mxu0 0.0
  %336 = vmatpush1.msra.mxu0 0.0
  %337 = vmatprep.subr.mxu0 0.0
  %338 = vmatpush1.msra.mxu0 0.0
  %339 = vmatprep.subr.mxu0 0.0
  %340 = vmatpush1.msra.mxu0 0.0
  %341 = vmatprep.subr.mxu0 0.0
  %342 = vmatpush1.msra.mxu0 0.0
  %343 = vmatprep.subr.mxu0 0.0
  %344 = vmatpush1.msra.mxu0 0.0
  %345 = vmatprep.subr.mxu0 0.0
  %346 = vmatpush1.msra.mxu0 0.0
  %347 = vmatprep.subr.mxu0 0.0
  %348 = vmatpush1.msra.mxu0 0.0
  %349 = vmatprep.subr.mxu0 0.0
  %350 = vmatpush1.msra.mxu0 0.0
  %351 = vmatprep.subr.mxu0 0.0
  %352 = vmatpush1.msra.mxu0 0.0
  %353 = vmatprep.subr.mxu0 0.0
  %354 = vmatpush1.msra.mxu0 0.0
  %355 = vmatprep.subr.mxu0 0.0
  %356 = vmatpush1.msra.mxu0 0.0
  %357 = vmatprep.subr.mxu0 0.0
  %358 = vmatpush1.msra.mxu0 0.0
  %359 = vmatprep.subr.mxu0 0.0
  %360 = vmatpush1.msra.mxu0 0.0
  %361 = vmatprep.mubr.f32.mxu0 0.0
  %362 = vmatmul.mubr.f32.gmra.mrb[0].mxu0 %v295
  %v363 = vpop.f32.mrb[0].mxu0
  %v364 = vadd.f32 0.0, %v363
  %v365 = vpop.f32.mrb[0].mxu0
  %v366 = vadd.f32 0.0, %v365
  %367 = vdwg.mxu0
  %v368 = vadd.f32 %v158, %v364
  %v369 = vxor.u32 %v368, 2147483648
  %v370 = vmul.f32 %v369, 1.442695
  %v371 = vpow.pop %v370
  %v372 = vadd.f32 %v371, 1.0
  %v373 = vrcp.pop %v372
  %v374 = vmul.f32 1.0, %v373
  %v375 = vadd.f32 %v366, %v48
  %v376 = vmul.f32 %v374, %v375
  %v377 = vadd.f32 %v160, %v376
  %v378 = vtanh.pop %v377
  %v379 = vsub.f32 1.0, %v374
  %381 = vrot.lane.b32.xlu0 %v378, 64
  %v382 = vpop.permute.xlu0 %381
  %v384 = vmul.f32 %v379, %v382
  %v385 = vmul.f32 %v374, %v291
  %v386 = vadd.f32 %v384, %v385
  %388 = vrot.lane.b32.xlu0 %v386, 64
  %v389 = vpop.permute.xlu0 %388
  %v390 = vsel %vm198, %v389, 0
  %392 = vmatprep.subr.mxu0 %v33
  %393 = vmatpush1.msra.mxu0 %v32
  %394 = vmatprep.subr.mxu0 %v35
  %395 = vmatpush1.msra.mxu0 %v34
  %396 = vmatprep.subr.mxu0 %v37
  %397 = vmatpush1.msra.mxu0 %v36
  %398 = vmatprep.subr.mxu0 %v39
  %399 = vmatpush1.msra.mxu0 %v38
  %400 = vmatprep.subr.mxu0 %v41
  %401 = vmatpush1.msra.mxu0 %v40
  %402 = vmatprep.subr.mxu0 %v43
  %403 = vmatpush1.msra.mxu0 %v42
  %404 = vmatprep.subr.mxu0 %v45
  %405 = vmatpush1.msra.mxu0 %v44
  %406 = vmatprep.subr.mxu0 %v47
  %407 = vmatpush1.msra.mxu0 %v46
  %408 = vmatprep.subr.mxu0 0.0
  %409 = vmatpush1.msra.mxu0 0.0
  %410 = vmatprep.subr.mxu0 0.0
  %411 = vmatpush1.msra.mxu0 0.0
  %412 = vmatprep.subr.mxu0 0.0
  %413 = vmatpush1.msra.mxu0 0.0
  %414 = vmatprep.subr.mxu0 0.0
  %415 = vmatpush1.msra.mxu0 0.0
  %416 = vmatprep.subr.mxu0 0.0
  %417 = vmatpush1.msra.mxu0 0.0
  %418 = vmatprep.subr.mxu0 0.0
  %419 = vmatpush1.msra.mxu0 0.0
  %420 = vmatprep.subr.mxu0 0.0
  %421 = vmatpush1.msra.mxu0 0.0
  %422 = vmatprep.subr.mxu0 0.0
  %423 = vmatpush1.msra.mxu0 0.0
  %424 = vmatprep.subr.mxu0 0.0
  %425 = vmatpush1.msra.mxu0 0.0
  %426 = vmatprep.subr.mxu0 0.0
  %427 = vmatpush1.msra.mxu0 0.0
  %428 = vmatprep.subr.mxu0 0.0
  %429 = vmatpush1.msra.mxu0 0.0
  %430 = vmatprep.subr.mxu0 0.0
  %431 = vmatpush1.msra.mxu0 0.0
  %432 = vmatprep.subr.mxu0 0.0
  %433 = vmatpush1.msra.mxu0 0.0
  %434 = vmatprep.subr.mxu0 0.0
  %435 = vmatpush1.msra.mxu0 0.0
  %436 = vmatprep.subr.mxu0 0.0
  %437 = vmatpush1.msra.mxu0 0.0
  %438 = vmatprep.subr.mxu0 0.0
  %439 = vmatpush1.msra.mxu0 0.0
  %440 = vmatprep.subr.mxu0 0.0
  %441 = vmatpush1.msra.mxu0 0.0
  %442 = vmatprep.subr.mxu0 0.0
  %443 = vmatpush1.msra.mxu0 0.0
  %444 = vmatprep.subr.mxu0 0.0
  %445 = vmatpush1.msra.mxu0 0.0
  %446 = vmatprep.subr.mxu0 0.0
  %447 = vmatpush1.msra.mxu0 0.0
  %448 = vmatprep.subr.mxu0 0.0
  %449 = vmatpush1.msra.mxu0 0.0
  %450 = vmatprep.subr.mxu0 0.0
  %451 = vmatpush1.msra.mxu0 0.0
  %452 = vmatprep.subr.mxu0 0.0
  %453 = vmatpush1.msra.mxu0 0.0
  %454 = vmatprep.subr.mxu0 0.0
  %455 = vmatpush1.msra.mxu0 0.0
  %456 = vmatprep.mubr.f32.mxu0 0.0
  %457 = vmatmul.mubr.f32.gmra.mrb[0].mxu0 %v390
  %v458 = vpop.f32.mrb[0].mxu0
  %v459 = vadd.f32 0.0, %v458
  %v460 = vpop.f32.mrb[0].mxu0
  %v461 = vadd.f32 0.0, %v460
  %462 = vdwg.mxu0
  %v463 = vadd.f32 %v164, %v459
  %v464 = vxor.u32 %v463, 2147483648
  %v465 = vmul.f32 %v464, 1.442695
  %v466 = vpow.pop %v465
  %v467 = vadd.f32 %v466, 1.0
  %v468 = vrcp.pop %v467
  %v469 = vmul.f32 1.0, %v468
  %v470 = vadd.f32 %v461, %v48
  %v471 = vmul.f32 %v469, %v470
  %v472 = vadd.f32 %v166, %v471
  %v473 = vtanh.pop %v472
  %v474 = vsub.f32 1.0, %v469
  %476 = vrot.lane.b32.xlu0 %v473, 64
  %v477 = vpop.permute.xlu0 %476
  %v479 = vmul.f32 %v474, %v477
  %v480 = vmul.f32 %v469, %v386
  %v481 = vadd.f32 %v479, %v480
  %483 = vrot.lane.b32.xlu0 %v481, 64
  %v484 = vpop.permute.xlu0 %483
  %v485 = vsel %vm198, %v484, 0
  %487 = vmatprep.subr.mxu0 %v33
  %488 = vmatpush1.msra.mxu0 %v32
  %489 = vmatprep.subr.mxu0 %v35
  %490 = vmatpush1.msra.mxu0 %v34
  %491 = vmatprep.subr.mxu0 %v37
  %492 = vmatpush1.msra.mxu0 %v36
  %493 = vmatprep.subr.mxu0 %v39
  %494 = vmatpush1.msra.mxu0 %v38
  %495 = vmatprep.subr.mxu0 %v41
  %496 = vmatpush1.msra.mxu0 %v40
  %497 = vmatprep.subr.mxu0 %v43
  %498 = vmatpush1.msra.mxu0 %v42
  %499 = vmatprep.subr.mxu0 %v45
  %500 = vmatpush1.msra.mxu0 %v44
  %501 = vmatprep.subr.mxu0 %v47
  %502 = vmatpush1.msra.mxu0 %v46
  %503 = vmatprep.subr.mxu0 0.0
  %504 = vmatpush1.msra.mxu0 0.0
  %505 = vmatprep.subr.mxu0 0.0
  %506 = vmatpush1.msra.mxu0 0.0
  %507 = vmatprep.subr.mxu0 0.0
  %508 = vmatpush1.msra.mxu0 0.0
  %509 = vmatprep.subr.mxu0 0.0
  %510 = vmatpush1.msra.mxu0 0.0
  %511 = vmatprep.subr.mxu0 0.0
  %512 = vmatpush1.msra.mxu0 0.0
  %513 = vmatprep.subr.mxu0 0.0
  %514 = vmatpush1.msra.mxu0 0.0
  %515 = vmatprep.subr.mxu0 0.0
  %516 = vmatpush1.msra.mxu0 0.0
  %517 = vmatprep.subr.mxu0 0.0
  %518 = vmatpush1.msra.mxu0 0.0
  %519 = vmatprep.subr.mxu0 0.0
  %520 = vmatpush1.msra.mxu0 0.0
  %521 = vmatprep.subr.mxu0 0.0
  %522 = vmatpush1.msra.mxu0 0.0
  %523 = vmatprep.subr.mxu0 0.0
  %524 = vmatpush1.msra.mxu0 0.0
  %525 = vmatprep.subr.mxu0 0.0
  %526 = vmatpush1.msra.mxu0 0.0
  %527 = vmatprep.subr.mxu0 0.0
  %528 = vmatpush1.msra.mxu0 0.0
  %529 = vmatprep.subr.mxu0 0.0
  %530 = vmatpush1.msra.mxu0 0.0
  %531 = vmatprep.subr.mxu0 0.0
  %532 = vmatpush1.msra.mxu0 0.0
  %533 = vmatprep.subr.mxu0 0.0
  %534 = vmatpush1.msra.mxu0 0.0
  %535 = vmatprep.subr.mxu0 0.0
  %536 = vmatpush1.msra.mxu0 0.0
  %537 = vmatprep.subr.mxu0 0.0
  %538 = vmatpush1.msra.mxu0 0.0
  %539 = vmatprep.subr.mxu0 0.0
  %540 = vmatpush1.msra.mxu0 0.0
  %541 = vmatprep.subr.mxu0 0.0
  %542 = vmatpush1.msra.mxu0 0.0
  %543 = vmatprep.subr.mxu0 0.0
  %544 = vmatpush1.msra.mxu0 0.0
  %545 = vmatprep.subr.mxu0 0.0
  %546 = vmatpush1.msra.mxu0 0.0
  %547 = vmatprep.subr.mxu0 0.0
  %548 = vmatpush1.msra.mxu0 0.0
  %549 = vmatprep.subr.mxu0 0.0
  %550 = vmatpush1.msra.mxu0 0.0
  %551 = vmatprep.mubr.f32.mxu0 0.0
  %552 = vmatmul.mubr.f32.gmra.mrb[0].mxu0 %v485
  %v553 = vpop.f32.mrb[0].mxu0
  %v554 = vadd.f32 0.0, %v553
  %v555 = vpop.f32.mrb[0].mxu0
  %v556 = vadd.f32 0.0, %v555
  %557 = vdwg.mxu0
  %v558 = vadd.f32 %v170, %v554
  %v559 = vxor.u32 %v558, 2147483648
  %v560 = vmul.f32 %v559, 1.442695
  %v561 = vpow.pop %v560
  %v562 = vadd.f32 %v561, 1.0
  %v563 = vrcp.pop %v562
  %v564 = vmul.f32 1.0, %v563
  %v565 = vadd.f32 %v556, %v48
  %v566 = vmul.f32 %v564, %v565
  %v567 = vadd.f32 %v172, %v566
  %v568 = vtanh.pop %v567
  %v569 = vsub.f32 1.0, %v564
  %571 = vrot.lane.b32.xlu0 %v568, 64
  %v572 = vpop.permute.xlu0 %571
  %v574 = vmul.f32 %v569, %v572
  %v575 = vmul.f32 %v564, %v481
  %v576 = vadd.f32 %v574, %v575
  %578 = vrot.lane.b32.xlu0 %v576, 64
  %v579 = vpop.permute.xlu0 %578
  %v580 = vsel %vm198, %v579, 0
  %582 = vmatprep.subr.mxu0 %v33
  %583 = vmatpush1.msra.mxu0 %v32
  %584 = vmatprep.subr.mxu0 %v35
  %585 = vmatpush1.msra.mxu0 %v34
  %586 = vmatprep.subr.mxu0 %v37
  %587 = vmatpush1.msra.mxu0 %v36
  %588 = vmatprep.subr.mxu0 %v39
  %589 = vmatpush1.msra.mxu0 %v38
  %590 = vmatprep.subr.mxu0 %v41
  %591 = vmatpush1.msra.mxu0 %v40
  %592 = vmatprep.subr.mxu0 %v43
  %593 = vmatpush1.msra.mxu0 %v42
  %594 = vmatprep.subr.mxu0 %v45
  %595 = vmatpush1.msra.mxu0 %v44
  %596 = vmatprep.subr.mxu0 %v47
  %597 = vmatpush1.msra.mxu0 %v46
  %598 = vmatprep.subr.mxu0 0.0
  %599 = vmatpush1.msra.mxu0 0.0
  %600 = vmatprep.subr.mxu0 0.0
  %601 = vmatpush1.msra.mxu0 0.0
  %602 = vmatprep.subr.mxu0 0.0
  %603 = vmatpush1.msra.mxu0 0.0
  %604 = vmatprep.subr.mxu0 0.0
  %605 = vmatpush1.msra.mxu0 0.0
  %606 = vmatprep.subr.mxu0 0.0
  %607 = vmatpush1.msra.mxu0 0.0
  %608 = vmatprep.subr.mxu0 0.0
  %609 = vmatpush1.msra.mxu0 0.0
  %610 = vmatprep.subr.mxu0 0.0
  %611 = vmatpush1.msra.mxu0 0.0
  %612 = vmatprep.subr.mxu0 0.0
  %613 = vmatpush1.msra.mxu0 0.0
  %614 = vmatprep.subr.mxu0 0.0
  %615 = vmatpush1.msra.mxu0 0.0
  %616 = vmatprep.subr.mxu0 0.0
  %617 = vmatpush1.msra.mxu0 0.0
  %618 = vmatprep.subr.mxu0 0.0
  %619 = vmatpush1.msra.mxu0 0.0
  %620 = vmatprep.subr.mxu0 0.0
  %621 = vmatpush1.msra.mxu0 0.0
  %622 = vmatprep.subr.mxu0 0.0
  %623 = vmatpush1.msra.mxu0 0.0
  %624 = vmatprep.subr.mxu0 0.0
  %625 = vmatpush1.msra.mxu0 0.0
  %626 = vmatprep.subr.mxu0 0.0
  %627 = vmatpush1.msra.mxu0 0.0
  %628 = vmatprep.subr.mxu0 0.0
  %629 = vmatpush1.msra.mxu0 0.0
  %630 = vmatprep.subr.mxu0 0.0
  %631 = vmatpush1.msra.mxu0 0.0
  %632 = vmatprep.subr.mxu0 0.0
  %633 = vmatpush1.msra.mxu0 0.0
  %634 = vmatprep.subr.mxu0 0.0
  %635 = vmatpush1.msra.mxu0 0.0
  %636 = vmatprep.subr.mxu0 0.0
  %637 = vmatpush1.msra.mxu0 0.0
  %638 = vmatprep.subr.mxu0 0.0
  %639 = vmatpush1.msra.mxu0 0.0
  %640 = vmatprep.subr.mxu0 0.0
  %641 = vmatpush1.msra.mxu0 0.0
  %642 = vmatprep.subr.mxu0 0.0
  %643 = vmatpush1.msra.mxu0 0.0
  %644 = vmatprep.subr.mxu0 0.0
  %645 = vmatpush1.msra.mxu0 0.0
  %646 = vmatprep.mubr.f32.mxu0 0.0
  %647 = vmatmul.mubr.f32.gmra.mrb[0].mxu0 %v580
  %v648 = vpop.f32.mrb[0].mxu0
  %v649 = vadd.f32 0.0, %v648
  %v650 = vpop.f32.mrb[0].mxu0
  %v651 = vadd.f32 0.0, %v650
  %652 = vdwg.mxu0
  %v653 = vadd.f32 %v176, %v649
  %v654 = vxor.u32 %v653, 2147483648
  %v655 = vmul.f32 %v654, 1.442695
  %v656 = vpow.pop %v655
  %v657 = vadd.f32 %v656, 1.0
  %v658 = vrcp.pop %v657
  %v659 = vmul.f32 1.0, %v658
  %v660 = vadd.f32 %v651, %v48
  %v661 = vmul.f32 %v659, %v660
  %v662 = vadd.f32 %v178, %v661
  %v663 = vtanh.pop %v662
  %v664 = vsub.f32 1.0, %v659
  %666 = vrot.lane.b32.xlu0 %v663, 64
  %v667 = vpop.permute.xlu0 %666
  %v669 = vmul.f32 %v664, %v667
  %v670 = vmul.f32 %v659, %v576
  %v671 = vadd.f32 %v669, %v670
  %673 = vrot.lane.b32.xlu0 %v671, 64
  %v674 = vpop.permute.xlu0 %673
  %v675 = vsel %vm198, %v674, 0
  %677 = vmatprep.subr.mxu0 %v33
  %678 = vmatpush1.msra.mxu0 %v32
  %679 = vmatprep.subr.mxu0 %v35
  %680 = vmatpush1.msra.mxu0 %v34
  %681 = vmatprep.subr.mxu0 %v37
  %682 = vmatpush1.msra.mxu0 %v36
  %683 = vmatprep.subr.mxu0 %v39
  %684 = vmatpush1.msra.mxu0 %v38
  %685 = vmatprep.subr.mxu0 %v41
  %686 = vmatpush1.msra.mxu0 %v40
  %687 = vmatprep.subr.mxu0 %v43
  %688 = vmatpush1.msra.mxu0 %v42
  %689 = vmatprep.subr.mxu0 %v45
  %690 = vmatpush1.msra.mxu0 %v44
  %691 = vmatprep.subr.mxu0 %v47
  %692 = vmatpush1.msra.mxu0 %v46
  %693 = vmatprep.subr.mxu0 0.0
  %694 = vmatpush1.msra.mxu0 0.0
  %695 = vmatprep.subr.mxu0 0.0
  %696 = vmatpush1.msra.mxu0 0.0
  %697 = vmatprep.subr.mxu0 0.0
  %698 = vmatpush1.msra.mxu0 0.0
  %699 = vmatprep.subr.mxu0 0.0
  %700 = vmatpush1.msra.mxu0 0.0
  %701 = vmatprep.subr.mxu0 0.0
  %702 = vmatpush1.msra.mxu0 0.0
  %703 = vmatprep.subr.mxu0 0.0
  %704 = vmatpush1.msra.mxu0 0.0
  %705 = vmatprep.subr.mxu0 0.0
  %706 = vmatpush1.msra.mxu0 0.0
  %707 = vmatprep.subr.mxu0 0.0
  %708 = vmatpush1.msra.mxu0 0.0
  %709 = vmatprep.subr.mxu0 0.0
  %710 = vmatpush1.msra.mxu0 0.0
  %711 = vmatprep.subr.mxu0 0.0
  %712 = vmatpush1.msra.mxu0 0.0
  %713 = vmatprep.subr.mxu0 0.0
  %714 = vmatpush1.msra.mxu0 0.0
  %715 = vmatprep.subr.mxu0 0.0
  %716 = vmatpush1.msra.mxu0 0.0
  %717 = vmatprep.subr.mxu0 0.0
  %718 = vmatpush1.msra.mxu0 0.0
  %719 = vmatprep.subr.mxu0 0.0
  %720 = vmatpush1.msra.mxu0 0.0
  %721 = vmatprep.subr.mxu0 0.0
  %722 = vmatpush1.msra.mxu0 0.0
  %723 = vmatprep.subr.mxu0 0.0
  %724 = vmatpush1.msra.mxu0 0.0
  %725 = vmatprep.subr.mxu0 0.0
  %726 = vmatpush1.msra.mxu0 0.0
  %727 = vmatprep.subr.mxu0 0.0
  %728 = vmatpush1.msra.mxu0 0.0
  %729 = vmatprep.subr.mxu0 0.0
  %730 = vmatpush1.msra.mxu0 0.0
  %731 = vmatprep.subr.mxu0 0.0
  %732 = vmatpush1.msra.mxu0 0.0
  %733 = vmatprep.subr.mxu0 0.0
  %734 = vmatpush1.msra.mxu0 0.0
  %735 = vmatprep.subr.mxu0 0.0
  %736 = vmatpush1.msra.mxu0 0.0
  %737 = vmatprep.subr.mxu0 0.0
  %738 = vmatpush1.msra.mxu0 0.0
  %739 = vmatprep.subr.mxu0 0.0
  %740 = vmatpush1.msra.mxu0 0.0
  %741 = vmatprep.mubr.f32.mxu0 0.0
  %742 = vmatmul.mubr.f32.gmra.mrb[0].mxu0 %v675
  %v743 = vpop.f32.mrb[0].mxu0
  %v744 = vadd.f32 0.0, %v743
  %v745 = vpop.f32.mrb[0].mxu0
  %v746 = vadd.f32 0.0, %v745
  %747 = vdwg.mxu0
  %v748 = vadd.f32 %v182, %v744
  %v749 = vxor.u32 %v748, 2147483648
  %v750 = vmul.f32 %v749, 1.442695
  %v751 = vpow.pop %v750
  %v752 = vadd.f32 %v751, 1.0
  %v753 = vrcp.pop %v752
  %v754 = vmul.f32 1.0, %v753
  %v755 = vadd.f32 %v746, %v48
  %v756 = vmul.f32 %v754, %v755
  %v757 = vadd.f32 %v184, %v756
  %v758 = vtanh.pop %v757
  %v759 = vsub.f32 1.0, %v754
  %761 = vrot.lane.b32.xlu0 %v758, 64
  %v762 = vpop.permute.xlu0 %761
  %v764 = vmul.f32 %v759, %v762
  %v765 = vmul.f32 %v754, %v671
  %v766 = vadd.f32 %v764, %v765
  %768 = vrot.lane.b32.xlu0 %v766, 64
  %v769 = vpop.permute.xlu0 %768
  %v770 = vsel %vm198, %v769, 0
  %772 = vmatprep.subr.mxu0 %v33
  %773 = vmatpush1.msra.mxu0 %v32
  %774 = vmatprep.subr.mxu0 %v35
  %775 = vmatpush1.msra.mxu0 %v34
  %776 = vmatprep.subr.mxu0 %v37
  %777 = vmatpush1.msra.mxu0 %v36
  %778 = vmatprep.subr.mxu0 %v39
  %779 = vmatpush1.msra.mxu0 %v38
  %780 = vmatprep.subr.mxu0 %v41
  %781 = vmatpush1.msra.mxu0 %v40
  %782 = vmatprep.subr.mxu0 %v43
  %783 = vmatpush1.msra.mxu0 %v42
  %784 = vmatprep.subr.mxu0 %v45
  %785 = vmatpush1.msra.mxu0 %v44
  %786 = vmatprep.subr.mxu0 %v47
  %787 = vmatpush1.msra.mxu0 %v46
  %788 = vmatprep.subr.mxu0 0.0
  %789 = vmatpush1.msra.mxu0 0.0
  %790 = vmatprep.subr.mxu0 0.0
  %791 = vmatpush1.msra.mxu0 0.0
  %792 = vmatprep.subr.mxu0 0.0
  %793 = vmatpush1.msra.mxu0 0.0
  %794 = vmatprep.subr.mxu0 0.0
  %795 = vmatpush1.msra.mxu0 0.0
  %796 = vmatprep.subr.mxu0 0.0
  %797 = vmatpush1.msra.mxu0 0.0
  %798 = vmatprep.subr.mxu0 0.0
  %799 = vmatpush1.msra.mxu0 0.0
  %800 = vmatprep.subr.mxu0 0.0
  %801 = vmatpush1.msra.mxu0 0.0
  %802 = vmatprep.subr.mxu0 0.0
  %803 = vmatpush1.msra.mxu0 0.0
  %804 = vmatprep.subr.mxu0 0.0
  %805 = vmatpush1.msra.mxu0 0.0
  %806 = vmatprep.subr.mxu0 0.0
  %807 = vmatpush1.msra.mxu0 0.0
  %808 = vmatprep.subr.mxu0 0.0
  %809 = vmatpush1.msra.mxu0 0.0
  %810 = vmatprep.subr.mxu0 0.0
  %811 = vmatpush1.msra.mxu0 0.0
  %812 = vmatprep.subr.mxu0 0.0
  %813 = vmatpush1.msra.mxu0 0.0
  %814 = vmatprep.subr.mxu0 0.0
  %815 = vmatpush1.msra.mxu0 0.0
  %816 = vmatprep.subr.mxu0 0.0
  %817 = vmatpush1.msra.mxu0 0.0
  %818 = vmatprep.subr.mxu0 0.0
  %819 = vmatpush1.msra.mxu0 0.0
  %820 = vmatprep.subr.mxu0 0.0
  %821 = vmatpush1.msra.mxu0 0.0
  %822 = vmatprep.subr.mxu0 0.0
  %823 = vmatpush1.msra.mxu0 0.0
  %824 = vmatprep.subr.mxu0 0.0
  %825 = vmatpush1.msra.mxu0 0.0
  %826 = vmatprep.subr.mxu0 0.0
  %827 = vmatpush1.msra.mxu0 0.0
  %828 = vmatprep.subr.mxu0 0.0
  %829 = vmatpush1.msra.mxu0 0.0
  %830 = vmatprep.subr.mxu0 0.0
  %831 = vmatpush1.msra.mxu0 0.0
  %832 = vmatprep.subr.mxu0 0.0
  %833 = vmatpush1.msra.mxu0 0.0
  %834 = vmatprep.subr.mxu0 0.0
  %835 = vmatpush1.msra.mxu0 0.0
  %836 = vmatprep.mubr.f32.mxu0 0.0
  %837 = vmatmul.mubr.f32.gmra.mrb[0].mxu0 %v770
  %v838 = vpop.f32.mrb[0].mxu0
  %v839 = vadd.f32 0.0, %v838
  %v840 = vpop.f32.mrb[0].mxu0
  %v841 = vadd.f32 0.0, %v840
  %842 = vdwg.mxu0
  %v843 = vadd.f32 %v188, %v839
  %v844 = vxor.u32 %v843, 2147483648
  %v845 = vmul.f32 %v844, 1.442695
  %v846 = vpow.pop %v845
  %v847 = vadd.f32 %v846, 1.0
  %v848 = vrcp.pop %v847
  %v849 = vmul.f32 1.0, %v848
  %v850 = vadd.f32 %v841, %v48
  %v851 = vmul.f32 %v849, %v850
  %v852 = vadd.f32 %v190, %v851
  %v853 = vtanh.pop %v852
  %v854 = vsub.f32 1.0, %v849
  %856 = vrot.lane.b32.xlu0 %v853, 64
  %v857 = vpop.permute.xlu0 %856
  %v859 = vmul.f32 %v854, %v857
  %v860 = vmul.f32 %v849, %v766
  %v861 = vadd.f32 %v859, %v860
  %863 = vrot.lane.b32.xlu0 %v861, 64
  %v864 = vpop.permute.xlu0 %863
  %v865 = vsel %vm198, %v864, 0
  %867 = vmatprep.subr.mxu0 %v33
  %868 = vmatpush1.msra.mxu0 %v32
  %869 = vmatprep.subr.mxu0 %v35
  %870 = vmatpush1.msra.mxu0 %v34
  %871 = vmatprep.subr.mxu0 %v37
  %872 = vmatpush1.msra.mxu0 %v36
  %873 = vmatprep.subr.mxu0 %v39
  %874 = vmatpush1.msra.mxu0 %v38
  %875 = vmatprep.subr.mxu0 %v41
  %876 = vmatpush1.msra.mxu0 %v40
  %877 = vmatprep.subr.mxu0 %v43
  %878 = vmatpush1.msra.mxu0 %v42
  %879 = vmatprep.subr.mxu0 %v45
  %880 = vmatpush1.msra.mxu0 %v44
  %881 = vmatprep.subr.mxu0 %v47
  %882 = vmatpush1.msra.mxu0 %v46
  %883 = vmatprep.subr.mxu0 0.0
  %884 = vmatpush1.msra.mxu0 0.0
  %885 = vmatprep.subr.mxu0 0.0
  %886 = vmatpush1.msra.mxu0 0.0
  %887 = vmatprep.subr.mxu0 0.0
  %888 = vmatpush1.msra.mxu0 0.0
  %889 = vmatprep.subr.mxu0 0.0
  %890 = vmatpush1.msra.mxu0 0.0
  %891 = vmatprep.subr.mxu0 0.0
  %892 = vmatpush1.msra.mxu0 0.0
  %893 = vmatprep.subr.mxu0 0.0
  %894 = vmatpush1.msra.mxu0 0.0
  %895 = vmatprep.subr.mxu0 0.0
  %896 = vmatpush1.msra.mxu0 0.0
  %897 = vmatprep.subr.mxu0 0.0
  %898 = vmatpush1.msra.mxu0 0.0
  %899 = vmatprep.subr.mxu0 0.0
  %900 = vmatpush1.msra.mxu0 0.0
  %901 = vmatprep.subr.mxu0 0.0
  %902 = vmatpush1.msra.mxu0 0.0
  %903 = vmatprep.subr.mxu0 0.0
  %904 = vmatpush1.msra.mxu0 0.0
  %905 = vmatprep.subr.mxu0 0.0
  %906 = vmatpush1.msra.mxu0 0.0
  %907 = vmatprep.subr.mxu0 0.0
  %908 = vmatpush1.msra.mxu0 0.0
  %909 = vmatprep.subr.mxu0 0.0
  %910 = vmatpush1.msra.mxu0 0.0
  %911 = vmatprep.subr.mxu0 0.0
  %912 = vmatpush1.msra.mxu0 0.0
  %913 = vmatprep.subr.mxu0 0.0
  %914 = vmatpush1.msra.mxu0 0.0
  %915 = vmatprep.subr.mxu0 0.0
  %916 = vmatpush1.msra.mxu0 0.0
  %917 = vmatprep.subr.mxu0 0.0
  %918 = vmatpush1.msra.mxu0 0.0
  %919 = vmatprep.subr.mxu0 0.0
  %920 = vmatpush1.msra.mxu0 0.0
  %921 = vmatprep.subr.mxu0 0.0
  %922 = vmatpush1.msra.mxu0 0.0
  %923 = vmatprep.subr.mxu0 0.0
  %924 = vmatpush1.msra.mxu0 0.0
  %925 = vmatprep.subr.mxu0 0.0
  %926 = vmatpush1.msra.mxu0 0.0
  %927 = vmatprep.subr.mxu0 0.0
  %928 = vmatpush1.msra.mxu0 0.0
  %929 = vmatprep.subr.mxu0 0.0
  %930 = vmatpush1.msra.mxu0 0.0
  %931 = vmatprep.mubr.f32.mxu0 0.0
  %932 = vmatmul.mubr.f32.gmra.mrb[0].mxu0 %v865
  %v933 = vpop.f32.mrb[0].mxu0
  %v934 = vadd.f32 0.0, %v933
  %v935 = vpop.f32.mrb[0].mxu0
  %v936 = vadd.f32 0.0, %v935
  %937 = vdwg.mxu0
  %v938 = vadd.f32 %v194, %v934
  %v939 = vxor.u32 %v938, 2147483648
  %v940 = vmul.f32 %v939, 1.442695
  %v941 = vpow.pop %v940
  %v942 = vadd.f32 %v941, 1.0
  %v943 = vrcp.pop %v942
  %v944 = vmul.f32 1.0, %v943
  %v945 = vadd.f32 %v936, %v48
  %v946 = vmul.f32 %v944, %v945
  %v947 = vadd.f32 %v196, %v946
  %v948 = vtanh.pop %v947
  %v949 = vsub.f32 1.0, %v944
  %951 = vrot.lane.b32.xlu0 %v948, 64
  %v952 = vpop.permute.xlu0 %951
  %v954 = vmul.f32 %v949, %v952
  %v955 = vmul.f32 %v944, %v861
  %v956 = vadd.f32 %v954, %v955
  %v957 = vld [vmem:[%s2] sm:$0xff]
  %v958 = vld [vmem:[%s2 + $0x8] sm:$0xff]
  %v959 = vld [vmem:[%s2 + $0x10] sm:$0xff]
  %v960 = vld [vmem:[%s2 + $0x18] sm:$0xff]
  %v961 = vld [vmem:[%s2 + $0x20] sm:$0xff]
  %v962 = vld [vmem:[%s2 + $0x28] sm:$0xff]
  %v963 = vld [vmem:[%s2 + $0x30] sm:$0xff]
  %v964 = vld [vmem:[%s2 + $0x38] sm:$0xff]
  %v965 = vld [vmem:[%s2 + $0x40] sm:$0x1]
  %v966 = vld [vmem:[%s2 + $0x48] sm:$0xff]
  %v967 = vld [vmem:[%s2 + $0x50] sm:$0xff]
  %v968 = vld [vmem:[%s2 + $0x58] sm:$0xff]
  %v969 = vld [vmem:[%s2 + $0x60] sm:$0xff]
  %v970 = vld [vmem:[%s2 + $0x68] sm:$0x1]
  %v971 = vlaneseq
  %v972 = vshrl.u32 %v971, 7
  %v973 = vsub.s32 0, %v972
  %v974 = vrot.slane %v965, %v973
  %976 = vrot.lane.b32.xlu0 %v956, 64
  %v977 = vpop.permute.xlu0 %976
  %v978 = vsel %vm198, %v977, 0
  %980 = vmatprep.subr.mxu0 0.0
  %981 = vmatpush1.msra.mxu0 %v957
  %982 = vmatprep.subr.mxu0 0.0
  %983 = vmatpush1.msra.mxu0 %v958
  %984 = vmatprep.subr.mxu0 0.0
  %985 = vmatpush1.msra.mxu0 %v959
  %986 = vmatprep.subr.mxu0 0.0
  %987 = vmatpush1.msra.mxu0 %v960
  %988 = vmatprep.subr.mxu0 0.0
  %989 = vmatpush1.msra.mxu0 %v961
  %990 = vmatprep.subr.mxu0 0.0
  %991 = vmatpush1.msra.mxu0 %v962
  %992 = vmatprep.subr.mxu0 0.0
  %993 = vmatpush1.msra.mxu0 %v963
  %994 = vmatprep.subr.mxu0 0.0
  %995 = vmatpush1.msra.mxu0 %v964
  %996 = vmatprep.subr.mxu0 0.0
  %997 = vmatpush1.msra.mxu0 0.0
  %998 = vmatprep.subr.mxu0 0.0
  %999 = vmatpush1.msra.mxu0 0.0
  %1000 = vmatprep.subr.mxu0 0.0
  %1001 = vmatpush1.msra.mxu0 0.0
  %1002 = vmatprep.subr.mxu0 0.0
  %1003 = vmatpush1.msra.mxu0 0.0
  %1004 = vmatprep.subr.mxu0 0.0
  %1005 = vmatpush1.msra.mxu0 0.0
  %1006 = vmatprep.subr.mxu0 0.0
  %1007 = vmatpush1.msra.mxu0 0.0
  %1008 = vmatprep.subr.mxu0 0.0
  %1009 = vmatpush1.msra.mxu0 0.0
  %1010 = vmatprep.subr.mxu0 0.0
  %1011 = vmatpush1.msra.mxu0 0.0
  %1012 = vmatprep.subr.mxu0 0.0
  %1013 = vmatpush1.msra.mxu0 0.0
  %1014 = vmatprep.subr.mxu0 0.0
  %1015 = vmatpush1.msra.mxu0 0.0
  %1016 = vmatprep.subr.mxu0 0.0
  %1017 = vmatpush1.msra.mxu0 0.0
  %1018 = vmatprep.subr.mxu0 0.0
  %1019 = vmatpush1.msra.mxu0 0.0
  %1020 = vmatprep.subr.mxu0 0.0
  %1021 = vmatpush1.msra.mxu0 0.0
  %1022 = vmatprep.subr.mxu0 0.0
  %1023 = vmatpush1.msra.mxu0 0.0
  %1024 = vmatprep.subr.mxu0 0.0
  %1025 = vmatpush1.msra.mxu0 0.0
  %1026 = vmatprep.subr.mxu0 0.0
  %1027 = vmatpush1.msra.mxu0 0.0
  %1028 = vmatprep.subr.mxu0 0.0
  %1029 = vmatpush1.msra.mxu0 0.0
  %1030 = vmatprep.subr.mxu0 0.0
  %1031 = vmatpush1.msra.mxu0 0.0
  %1032 = vmatprep.subr.mxu0 0.0
  %1033 = vmatpush1.msra.mxu0 0.0
  %1034 = vmatprep.subr.mxu0 0.0
  %1035 = vmatpush1.msra.mxu0 0.0
  %1036 = vmatprep.subr.mxu0 0.0
  %1037 = vmatpush1.msra.mxu0 0.0
  %1038 = vmatprep.subr.mxu0 0.0
  %1039 = vmatpush1.msra.mxu0 0.0
  %1040 = vmatprep.subr.mxu0 0.0
  %1041 = vmatpush1.msra.mxu0 0.0
  %1042 = vmatprep.subr.mxu0 0.0
  %1043 = vmatpush1.msra.mxu0 0.0
  %1044 = vmatprep.mubr.f32.mxu0 0.0
  %1045 = vmatmul.mubr.f32.gmra.mrb[0].mxu0 %v978
  %v1046 = vpop.f32.mrb[0].mxu0
  %v1047 = vadd.f32 %v974, %v1046
  %v1048 = vpop.f32.mrb[0].mxu0
  %1049 = vdwg.mxu0
  %v1050 = vmax.f32 %v1047, 0.0
  %v1051 = vlaneseq
  %v1052 = vshrl.u32 %v1051, 7
  %v1053 = vsub.s32 0, %v1052
  %v1054 = vrot.slane %v970, %v1053
  %v1056 = vsel %vm60, %v1050, 0
  %1058 = vmatprep.subr.mxu0 0.0
  %1059 = vmatpush1.msra.mxu0 %v966
  %1060 = vmatprep.subr.mxu0 0.0
  %1061 = vmatpush1.msra.mxu0 %v967
  %1062 = vmatprep.subr.mxu0 0.0
  %1063 = vmatpush1.msra.mxu0 %v968
  %1064 = vmatprep.subr.mxu0 0.0
  %1065 = vmatpush1.msra.mxu0 %v969
  %1066 = vmatprep.subr.mxu0 0.0
  %1067 = vmatpush1.msra.mxu0 0.0
  %1068 = vmatprep.subr.mxu0 0.0
  %1069 = vmatpush1.msra.mxu0 0.0
  %1070 = vmatprep.subr.mxu0 0.0
  %1071 = vmatpush1.msra.mxu0 0.0
  %1072 = vmatprep.subr.mxu0 0.0
  %1073 = vmatpush1.msra.mxu0 0.0
  %1074 = vmatprep.subr.mxu0 0.0
  %1075 = vmatpush1.msra.mxu0 0.0
  %1076 = vmatprep.subr.mxu0 0.0
  %1077 = vmatpush1.msra.mxu0 0.0
  %1078 = vmatprep.subr.mxu0 0.0
  %1079 = vmatpush1.msra.mxu0 0.0
  %1080 = vmatprep.subr.mxu0 0.0
  %1081 = vmatpush1.msra.mxu0 0.0
  %1082 = vmatprep.subr.mxu0 0.0
  %1083 = vmatpush1.msra.mxu0 0.0
  %1084 = vmatprep.subr.mxu0 0.0
  %1085 = vmatpush1.msra.mxu0 0.0
  %1086 = vmatprep.subr.mxu0 0.0
  %1087 = vmatpush1.msra.mxu0 0.0
  %1088 = vmatprep.subr.mxu0 0.0
  %1089 = vmatpush1.msra.mxu0 0.0
  %1090 = vmatprep.subr.mxu0 0.0
  %1091 = vmatpush1.msra.mxu0 0.0
  %1092 = vmatprep.subr.mxu0 0.0
  %1093 = vmatpush1.msra.mxu0 0.0
  %1094 = vmatprep.subr.mxu0 0.0
  %1095 = vmatpush1.msra.mxu0 0.0
  %1096 = vmatprep.subr.mxu0 0.0
  %1097 = vmatpush1.msra.mxu0 0.0
  %1098 = vmatprep.subr.mxu0 0.0
  %1099 = vmatpush1.msra.mxu0 0.0
  %1100 = vmatprep.subr.mxu0 0.0
  %1101 = vmatpush1.msra.mxu0 0.0
  %1102 = vmatprep.subr.mxu0 0.0
  %1103 = vmatpush1.msra.mxu0 0.0
  %1104 = vmatprep.subr.mxu0 0.0
  %1105 = vmatpush1.msra.mxu0 0.0
  %1106 = vmatprep.subr.mxu0 0.0
  %1107 = vmatpush1.msra.mxu0 0.0
  %1108 = vmatprep.subr.mxu0 0.0
  %1109 = vmatpush1.msra.mxu0 0.0
  %1110 = vmatprep.subr.mxu0 0.0
  %1111 = vmatpush1.msra.mxu0 0.0
  %1112 = vmatprep.subr.mxu0 0.0
  %1113 = vmatpush1.msra.mxu0 0.0
  %1114 = vmatprep.subr.mxu0 0.0
  %1115 = vmatpush1.msra.mxu0 0.0
  %1116 = vmatprep.subr.mxu0 0.0
  %1117 = vmatpush1.msra.mxu0 0.0
  %1118 = vmatprep.subr.mxu0 0.0
  %1119 = vmatpush1.msra.mxu0 0.0
  %1120 = vmatprep.subr.mxu0 0.0
  %1121 = vmatpush1.msra.mxu0 0.0
  %1122 = vmatprep.mubr.f32.mxu0 0.0
  %1123 = vmatmul.mubr.f32.gmra.mrb[0].mxu0 %v1056
  %v1124 = vpop.f32.mrb[0].mxu0
  %v1125 = vadd.f32 %v1054, %v1124
  %v1126 = vpop.f32.mrb[0].mxu0
  %1127 = vdwg.mxu0
  %1128 = vst.msk [vmem:[%s3] sm:$0xff] %vm60, %v1125
  // Predicated region
  $region14: #{gru_model_forward.1} parent=0 // pred_check
    _
  $region15: #{gru_model_forward.1} parent=0 // pred_check_branch
    %1130 = sbr.rel (0) target = $region17
  $region16: #{gru_model_forward.1} parent=0 // pred_region
    _
  $region17: #{gru_model_forward.1} parent=0 // pred_fallthru
    _
  // Predicated region
  $region18: #{gru_model_forward.1} parent=0 // pred_check
    _
  $region19: #{gru_model_forward.1} parent=0 // pred_check_branch
    %1132 = sbr.rel (0) target = $region21
  $region20: #{gru_model_forward.1} parent=0 // pred_region
    _
  $region21: #{gru_model_forward.1} parent=0 // pred_fallthru
    _

</llo_original>
